<compile_context>
chip_gen: v7x
topology: tpu7x:2x2x1
jax: 0.10.0
libtpu: 0.0.40
codegen_flags: <defaults>
</compile_context>

<pallas_src>
import functools

import jax
import jax.numpy as jnp
import numpy as np
from jax.experimental import pallas as pl
from jax.experimental.pallas import tpu as pltpu


# ----------------------------- one-time packing ------------------------------
def pack_hybrid_params(params, *, weight_dtype=jnp.bfloat16):
    """Pack (and pre-transpose) all chain weights ONCE at init.

    chain 0     = big net   : Wall[0, l]   = Wbig[l]
    chain 1 + m = small net : Wall[1+m, l] = Wlil[l, m].T   (so every in-kernel
                                              matmul is a native y @ W feed)
    Returns Wall (C, L, F, F) in `weight_dtype`, Ball (C, L, 1, F) in f32.
    """
    Wbig, Bbig = params["Wbig"], params["Bbig"]
    Wlil, Blil = params["Wlil"], params["Blil"]
    WlilT = jnp.swapaxes(Wlil, -1, -2)                                # (L, S, F, F)
    Wall = jnp.concatenate([Wbig[None], jnp.swapaxes(WlilT, 0, 1)], axis=0)
    Ball = jnp.concatenate(
        [Bbig[None, :, None, :], jnp.swapaxes(Blil, 0, 1)[:, :, None, :]], axis=0
    )                                                                 # (C, L, 1, F)
    return Wall.astype(weight_dtype), Ball.astype(jnp.float32)


# --------------------------------- kernel ------------------------------------
def _hybrid_kernel(x_ref, w_ref, b_ref, o_ref, *, split, n_lil, n_small,
                   n_layers, big_tile):
    """All chains in one grid step; the full weight stack is VMEM-resident."""
    f32 = jnp.float32
    w_dt = w_ref.dtype

    def run_chain(row0, rows, chain):
        # bf16 MXU feeds, f32 accumulation + f32 bias add (stays in registers).
        y = x_ref[pl.ds(row0, rows), :].astype(f32)
        for l in range(n_layers):            # static unroll: L is small here
            y = jnp.dot(y.astype(w_dt), w_ref[chain, l],
                        preferred_element_type=f32) + b_ref[chain, l]
        o_ref[pl.ds(row0, rows), :] = y.astype(o_ref.dtype)
        # TODO(synk): for large n_layers use a non-unrolled lax.fori_loop or a
        # per-layer grid axis so live ranges stay bounded.

    # Big net: row blocks of <= big_tile rows (bounds live f32 y, fills MXU).
    r0 = 0
    while r0 < split:
        rows = min(big_tile, split - r0)
        run_chain(r0, rows, 0)
        r0 += rows

    # Small nets: one (n_lil, F) chain each.
    if n_lil > 0:
        for m in range(n_small):
            run_chain(split + m * n_lil, n_lil, 1 + m)


# ------------------------------ forward wrapper -------------------------------
def hybrid_forward(packed, x, slices, *, big_tile=256):
    Wall, Ball = packed
    split = slices[0].stop
    n_lil = slices[1].stop - slices[1].start
    C, n_layers, F, _ = Wall.shape
    n_small = C - 1
    N = x.shape[0]
    assert N == split + n_small * n_lil, "x rows must match slices"
    if N == 0:
        return jnp.zeros((0, F), x.dtype)

    kernel = functools.partial(
        _hybrid_kernel, split=split, n_lil=n_lil, n_small=n_small,
        n_layers=n_layers, big_tile=big_tile)

    # Explicit VMEM budget (input/output blocks are double-buffered).
    nbytes = lambda a: int(np.prod(a.shape)) * jnp.dtype(a.dtype).itemsize
    need = 2 * (2 * nbytes(x) + nbytes(Wall) + nbytes(Ball)) + (2 << 20)
    vmem_limit = int(min(max(need, 16 << 20), 48 << 20))

    return pl.pallas_call(
        kernel,
        out_shape=jax.ShapeDtypeStruct((N, F), x.dtype),
        grid=(1,),
        in_specs=[
            pl.BlockSpec((N, F), lambda i: (0, 0)),                     # activations
            pl.BlockSpec((C, n_layers, F, F), lambda i: (0, 0, 0, 0)),  # all weights (resident)
            pl.BlockSpec((C, n_layers, 1, F), lambda i: (0, 0, 0, 0)),  # all biases
        ],
        out_specs=pl.BlockSpec((N, F), lambda i: (0, 0)),
        compiler_params=pltpu.CompilerParams(
            dimension_semantics=("arbitrary",),
            vmem_limit_bytes=vmem_limit,
        ),
    )(x, Wall, Ball)


# ------------------------------ pure-JAX reference ---------------------------
def hybrid_reference(params, x, slices):
    split = slices[0].stop
    n_lil = slices[1].stop - slices[1].start
    n_layers = params["Wbig"].shape[0]
    ybig = x[:split]
    for l in range(n_layers):
        ybig = ybig @ params["Wbig"][l] + params["Bbig"][l]
    ylil = x[split:]
    for l in range(n_layers):
        W = jnp.repeat(params["Wlil"][l], n_lil, axis=0)   # repeat_interleave
        B = jnp.repeat(params["Blil"][l], n_lil, axis=0)
        ylil = jnp.einsum("nfg,ng->nf", W, ylil) + B
    return jnp.concatenate([ybig, ylil], axis=0)


if __name__ == "__main__":
    # TODO(synk): torch.cuda streams / custom CUDA extension / nvtx have no
    # Pallas equivalent; both paths are fused into one kernel instead.
    n_features, n_models, n_layers = 128, 4, 3
    split, n_lil = 16, 8
    n_small = n_models - 1
    N = split + n_small * n_lil

    key = jax.random.PRNGKey(0)
    kx, kw, kb, kwl, kbl = jax.random.split(key, 5)
    params = {
        "Wbig": 0.1 * jax.random.normal(kw, (n_layers, n_features, n_features), jnp.float32),
        "Bbig": 0.1 * jax.random.normal(kb, (n_layers, n_features), jnp.float32),
        "Wlil": 0.1 * jax.random.normal(kwl, (n_layers, n_small, n_features, n_features), jnp.float32),
        "Blil": 0.1 * jax.random.normal(kbl, (n_layers, n_small, n_features), jnp.float32),
    }
    x = jax.random.normal(kx, (N, n_features), jnp.float32)
    slices = (slice(0, split), slice(split, split + n_lil))

    # Packing happens ONCE (would be cached at module init in production).
    packed = pack_hybrid_params(params)

    out = jax.block_until_ready(hybrid_forward(packed, x, slices))
    ref = jax.block_until_ready(hybrid_reference(params, x, slices))
    np.testing.assert_allclose(np.asarray(out), np.asarray(ref), rtol=2e-2, atol=2e-2)

    print("KERNEL_OK")
</pallas_src>

<mosaic_0001>
module attributes {stable_mosaic.version = 11 : i64} {
  func.func @_hybrid_kernel(%arg0: i32, %arg1: memref<40x128xf32, #tpu.memory_space<vmem>>, %arg2: memref<4x3x128x128xbf16, #tpu.memory_space<vmem>>, %arg3: memref<4x3x1x128xf32, #tpu.memory_space<vmem>>, %arg4: memref<40x128xf32, #tpu.memory_space<vmem>>) attributes {dimension_semantics = [#tpu.dimension_semantics<arbitrary>], iteration_bounds = array<i64: 1>, scalar_prefetch = 0 : i64, scratch_operands = 0 : i64, tpu.core_type = #tpu.core_type<tc>, window_params = [{pipeline_mode = #tpu.pipeline_mode<synchronous>, transform_indices = @transform_0, window_bounds = array<i64: 40, 128>}, {pipeline_mode = #tpu.pipeline_mode<synchronous>, transform_indices = @transform_1, window_bounds = array<i64: 4, 3, 128, 128>}, {pipeline_mode = #tpu.pipeline_mode<synchronous>, transform_indices = @transform_2, window_bounds = array<i64: 4, 3, 1, 128>}, {pipeline_mode = #tpu.pipeline_mode<synchronous>, transform_indices = @transform_3, window_bounds = array<i64: 40, 128>}]} {
    %c0 = arith.constant 0 : index
    %c0_0 = arith.constant 0 : index
    %0 = vector.load %arg1[%c0, %c0_0] : memref<40x128xf32, #tpu.memory_space<vmem>>, vector<16x128xf32>
    %1 = arith.truncf %0 : vector<16x128xf32> to vector<16x128xbf16>
    %c0_1 = arith.constant 0 : index
    %c0_2 = arith.constant 0 : index
    %c0_3 = arith.constant 0 : index
    %c0_4 = arith.constant 0 : index
    %2 = vector.load %arg2[%c0_1, %c0_2, %c0_3, %c0_4] : memref<4x3x128x128xbf16, #tpu.memory_space<vmem>>, vector<1x1x128x128xbf16>
    %3 = vector.shape_cast %2 : vector<1x1x128x128xbf16> to vector<128x128xbf16>
    %cst = arith.constant dense<0.000000e+00> : vector<16x128xf32>
    %4 = tpu.matmul %1, %3, %cst {dimension_numbers = #tpu.dot_dimension_numbers<[1], [0], [0], [1], [0, 0, 1, 1], [], []>} : vector<16x128xbf16>, vector<128x128xbf16>, vector<16x128xf32> -> vector<16x128xf32>
    %c0_5 = arith.constant 0 : index
    %c0_6 = arith.constant 0 : index
    %c0_7 = arith.constant 0 : index
    %c0_8 = arith.constant 0 : index
    %5 = vector.load %arg3[%c0_5, %c0_6, %c0_7, %c0_8] : memref<4x3x1x128xf32, #tpu.memory_space<vmem>>, vector<1x1x1x128xf32>
    %6 = vector.shape_cast %5 : vector<1x1x1x128xf32> to vector<1x128xf32>
    %7 = vector.broadcast %6 : vector<1x128xf32> to vector<16x128xf32>
    %8 = arith.addf %4, %7 : vector<16x128xf32>
    %9 = arith.truncf %8 : vector<16x128xf32> to vector<16x128xbf16>
    %c0_9 = arith.constant 0 : index
    %c1 = arith.constant 1 : index
    %c0_10 = arith.constant 0 : index
    %c0_11 = arith.constant 0 : index
    %10 = vector.load %arg2[%c0_9, %c1, %c0_10, %c0_11] : memref<4x3x128x128xbf16, #tpu.memory_space<vmem>>, vector<1x1x128x128xbf16>
    %11 = vector.shape_cast %10 : vector<1x1x128x128xbf16> to vector<128x128xbf16>
    %cst_12 = arith.constant dense<0.000000e+00> : vector<16x128xf32>
    %12 = tpu.matmul %9, %11, %cst_12 {dimension_numbers = #tpu.dot_dimension_numbers<[1], [0], [0], [1], [0, 0, 1, 1], [], []>} : vector<16x128xbf16>, vector<128x128xbf16>, vector<16x128xf32> -> vector<16x128xf32>
    %c0_13 = arith.constant 0 : index
    %c1_14 = arith.constant 1 : index
    %c0_15 = arith.constant 0 : index
    %c0_16 = arith.constant 0 : index
    %13 = vector.load %arg3[%c0_13, %c1_14, %c0_15, %c0_16] : memref<4x3x1x128xf32, #tpu.memory_space<vmem>>, vector<1x1x1x128xf32>
    %14 = vector.shape_cast %13 : vector<1x1x1x128xf32> to vector<1x128xf32>
    %15 = vector.broadcast %14 : vector<1x128xf32> to vector<16x128xf32>
    %16 = arith.addf %12, %15 : vector<16x128xf32>
    %17 = arith.truncf %16 : vector<16x128xf32> to vector<16x128xbf16>
    %c0_17 = arith.constant 0 : index
    %c2 = arith.constant 2 : index
    %c0_18 = arith.constant 0 : index
    %c0_19 = arith.constant 0 : index
    %18 = vector.load %arg2[%c0_17, %c2, %c0_18, %c0_19] : memref<4x3x128x128xbf16, #tpu.memory_space<vmem>>, vector<1x1x128x128xbf16>
    %19 = vector.shape_cast %18 : vector<1x1x128x128xbf16> to vector<128x128xbf16>
    %cst_20 = arith.constant dense<0.000000e+00> : vector<16x128xf32>
    %20 = tpu.matmul %17, %19, %cst_20 {dimension_numbers = #tpu.dot_dimension_numbers<[1], [0], [0], [1], [0, 0, 1, 1], [], []>} : vector<16x128xbf16>, vector<128x128xbf16>, vector<16x128xf32> -> vector<16x128xf32>
    %c0_21 = arith.constant 0 : index
    %c2_22 = arith.constant 2 : index
    %c0_23 = arith.constant 0 : index
    %c0_24 = arith.constant 0 : index
    %21 = vector.load %arg3[%c0_21, %c2_22, %c0_23, %c0_24] : memref<4x3x1x128xf32, #tpu.memory_space<vmem>>, vector<1x1x1x128xf32>
    %22 = vector.shape_cast %21 : vector<1x1x1x128xf32> to vector<1x128xf32>
    %23 = vector.broadcast %22 : vector<1x128xf32> to vector<16x128xf32>
    %24 = arith.addf %20, %23 : vector<16x128xf32>
    %c0_25 = arith.constant 0 : index
    %c0_26 = arith.constant 0 : index
    %25 = vector.load %arg4[%c0_25, %c0_26] : memref<40x128xf32, #tpu.memory_space<vmem>>, vector<16x128xf32>
    tpu.vector_store %arg4[%c0_25, %c0_26], %24 {strides = array<i32>} : memref<40x128xf32, #tpu.memory_space<vmem>>, vector<16x128xf32>,
    %c16 = arith.constant 16 : index
    %c0_27 = arith.constant 0 : index
    %26 = vector.load %arg1[%c16, %c0_27] : memref<40x128xf32, #tpu.memory_space<vmem>>, vector<8x128xf32>
    %27 = arith.truncf %26 : vector<8x128xf32> to vector<8x128xbf16>
    %c1_28 = arith.constant 1 : index
    %c0_29 = arith.constant 0 : index
    %c0_30 = arith.constant 0 : index
    %c0_31 = arith.constant 0 : index
    %28 = vector.load %arg2[%c1_28, %c0_29, %c0_30, %c0_31] : memref<4x3x128x128xbf16, #tpu.memory_space<vmem>>, vector<1x1x128x128xbf16>
    %29 = vector.shape_cast %28 : vector<1x1x128x128xbf16> to vector<128x128xbf16>
    %cst_32 = arith.constant dense<0.000000e+00> : vector<8x128xf32>
    %30 = tpu.matmul %27, %29, %cst_32 {dimension_numbers = #tpu.dot_dimension_numbers<[1], [0], [0], [1], [0, 0, 1, 1], [], []>} : vector<8x128xbf16>, vector<128x128xbf16>, vector<8x128xf32> -> vector<8x128xf32>
    %c1_33 = arith.constant 1 : index
    %c0_34 = arith.constant 0 : index
    %c0_35 = arith.constant 0 : index
    %c0_36 = arith.constant 0 : index
    %31 = vector.load %arg3[%c1_33, %c0_34, %c0_35, %c0_36] : memref<4x3x1x128xf32, #tpu.memory_space<vmem>>, vector<1x1x1x128xf32>
    %32 = vector.shape_cast %31 : vector<1x1x1x128xf32> to vector<1x128xf32>
    %33 = vector.broadcast %32 : vector<1x128xf32> to vector<8x128xf32>
    %34 = arith.addf %30, %33 : vector<8x128xf32>
    %35 = arith.truncf %34 : vector<8x128xf32> to vector<8x128xbf16>
    %c1_37 = arith.constant 1 : index
    %c1_38 = arith.constant 1 : index
    %c0_39 = arith.constant 0 : index
    %c0_40 = arith.constant 0 : index
    %36 = vector.load %arg2[%c1_37, %c1_38, %c0_39, %c0_40] : memref<4x3x128x128xbf16, #tpu.memory_space<vmem>>, vector<1x1x128x128xbf16>
    %37 = vector.shape_cast %36 : vector<1x1x128x128xbf16> to vector<128x128xbf16>
    %cst_41 = arith.constant dense<0.000000e+00> : vector<8x128xf32>
    %38 = tpu.matmul %35, %37, %cst_41 {dimension_numbers = #tpu.dot_dimension_numbers<[1], [0], [0], [1], [0, 0, 1, 1], [], []>} : vector<8x128xbf16>, vector<128x128xbf16>, vector<8x128xf32> -> vector<8x128xf32>
    %c1_42 = arith.constant 1 : index
    %c1_43 = arith.constant 1 : index
    %c0_44 = arith.constant 0 : index
    %c0_45 = arith.constant 0 : index
    %39 = vector.load %arg3[%c1_42, %c1_43, %c0_44, %c0_45] : memref<4x3x1x128xf32, #tpu.memory_space<vmem>>, vector<1x1x1x128xf32>
    %40 = vector.shape_cast %39 : vector<1x1x1x128xf32> to vector<1x128xf32>
    %41 = vector.broadcast %40 : vector<1x128xf32> to vector<8x128xf32>
    %42 = arith.addf %38, %41 : vector<8x128xf32>
    %43 = arith.truncf %42 : vector<8x128xf32> to vector<8x128xbf16>
    %c1_46 = arith.constant 1 : index
    %c2_47 = arith.constant 2 : index
    %c0_48 = arith.constant 0 : index
    %c0_49 = arith.constant 0 : index
    %44 = vector.load %arg2[%c1_46, %c2_47, %c0_48, %c0_49] : memref<4x3x128x128xbf16, #tpu.memory_space<vmem>>, vector<1x1x128x128xbf16>
    %45 = vector.shape_cast %44 : vector<1x1x128x128xbf16> to vector<128x128xbf16>
    %cst_50 = arith.constant dense<0.000000e+00> : vector<8x128xf32>
    %46 = tpu.matmul %43, %45, %cst_50 {dimension_numbers = #tpu.dot_dimension_numbers<[1], [0], [0], [1], [0, 0, 1, 1], [], []>} : vector<8x128xbf16>, vector<128x128xbf16>, vector<8x128xf32> -> vector<8x128xf32>
    %c1_51 = arith.constant 1 : index
    %c2_52 = arith.constant 2 : index
    %c0_53 = arith.constant 0 : index
    %c0_54 = arith.constant 0 : index
    %47 = vector.load %arg3[%c1_51, %c2_52, %c0_53, %c0_54] : memref<4x3x1x128xf32, #tpu.memory_space<vmem>>, vector<1x1x1x128xf32>
    %48 = vector.shape_cast %47 : vector<1x1x1x128xf32> to vector<1x128xf32>
    %49 = vector.broadcast %48 : vector<1x128xf32> to vector<8x128xf32>
    %50 = arith.addf %46, %49 : vector<8x128xf32>
    %c16_55 = arith.constant 16 : index
    %c0_56 = arith.constant 0 : index
    %51 = vector.load %arg4[%c16_55, %c0_56] : memref<40x128xf32, #tpu.memory_space<vmem>>, vector<8x128xf32>
    tpu.vector_store %arg4[%c16_55, %c0_56], %50 {strides = array<i32>} : memref<40x128xf32, #tpu.memory_space<vmem>>, vector<8x128xf32>,
    %c24 = arith.constant 24 : index
    %c0_57 = arith.constant 0 : index
    %52 = vector.load %arg1[%c24, %c0_57] : memref<40x128xf32, #tpu.memory_space<vmem>>, vector<8x128xf32>
    %53 = arith.truncf %52 : vector<8x128xf32> to vector<8x128xbf16>
    %c2_58 = arith.constant 2 : index
    %c0_59 = arith.constant 0 : index
    %c0_60 = arith.constant 0 : index
    %c0_61 = arith.constant 0 : index
    %54 = vector.load %arg2[%c2_58, %c0_59, %c0_60, %c0_61] : memref<4x3x128x128xbf16, #tpu.memory_space<vmem>>, vector<1x1x128x128xbf16>
    %55 = vector.shape_cast %54 : vector<1x1x128x128xbf16> to vector<128x128xbf16>
    %cst_62 = arith.constant dense<0.000000e+00> : vector<8x128xf32>
    %56 = tpu.matmul %53, %55, %cst_62 {dimension_numbers = #tpu.dot_dimension_numbers<[1], [0], [0], [1], [0, 0, 1, 1], [], []>} : vector<8x128xbf16>, vector<128x128xbf16>, vector<8x128xf32> -> vector<8x128xf32>
    %c2_63 = arith.constant 2 : index
    %c0_64 = arith.constant 0 : index
    %c0_65 = arith.constant 0 : index
    %c0_66 = arith.constant 0 : index
    %57 = vector.load %arg3[%c2_63, %c0_64, %c0_65, %c0_66] : memref<4x3x1x128xf32, #tpu.memory_space<vmem>>, vector<1x1x1x128xf32>
    %58 = vector.shape_cast %57 : vector<1x1x1x128xf32> to vector<1x128xf32>
    %59 = vector.broadcast %58 : vector<1x128xf32> to vector<8x128xf32>
    %60 = arith.addf %56, %59 : vector<8x128xf32>
    %61 = arith.truncf %60 : vector<8x128xf32> to vector<8x128xbf16>
    %c2_67 = arith.constant 2 : index
    %c1_68 = arith.constant 1 : index
    %c0_69 = arith.constant 0 : index
    %c0_70 = arith.constant 0 : index
    %62 = vector.load %arg2[%c2_67, %c1_68, %c0_69, %c0_70] : memref<4x3x128x128xbf16, #tpu.memory_space<vmem>>, vector<1x1x128x128xbf16>
    %63 = vector.shape_cast %62 : vector<1x1x128x128xbf16> to vector<128x128xbf16>
    %cst_71 = arith.constant dense<0.000000e+00> : vector<8x128xf32>
    %64 = tpu.matmul %61, %63, %cst_71 {dimension_numbers = #tpu.dot_dimension_numbers<[1], [0], [0], [1], [0, 0, 1, 1], [], []>} : vector<8x128xbf16>, vector<128x128xbf16>, vector<8x128xf32> -> vector<8x128xf32>
    %c2_72 = arith.constant 2 : index
    %c1_73 = arith.constant 1 : index
    %c0_74 = arith.constant 0 : index
    %c0_75 = arith.constant 0 : index
    %65 = vector.load %arg3[%c2_72, %c1_73, %c0_74, %c0_75] : memref<4x3x1x128xf32, #tpu.memory_space<vmem>>, vector<1x1x1x128xf32>
    %66 = vector.shape_cast %65 : vector<1x1x1x128xf32> to vector<1x128xf32>
    %67 = vector.broadcast %66 : vector<1x128xf32> to vector<8x128xf32>
    %68 = arith.addf %64, %67 : vector<8x128xf32>
    %69 = arith.truncf %68 : vector<8x128xf32> to vector<8x128xbf16>
    %c2_76 = arith.constant 2 : index
    %c2_77 = arith.constant 2 : index
    %c0_78 = arith.constant 0 : index
    %c0_79 = arith.constant 0 : index
    %70 = vector.load %arg2[%c2_76, %c2_77, %c0_78, %c0_79] : memref<4x3x128x128xbf16, #tpu.memory_space<vmem>>, vector<1x1x128x128xbf16>
    %71 = vector.shape_cast %70 : vector<1x1x128x128xbf16> to vector<128x128xbf16>
    %cst_80 = arith.constant dense<0.000000e+00> : vector<8x128xf32>
    %72 = tpu.matmul %69, %71, %cst_80 {dimension_numbers = #tpu.dot_dimension_numbers<[1], [0], [0], [1], [0, 0, 1, 1], [], []>} : vector<8x128xbf16>, vector<128x128xbf16>, vector<8x128xf32> -> vector<8x128xf32>
    %c2_81 = arith.constant 2 : index
    %c2_82 = arith.constant 2 : index
    %c0_83 = arith.constant 0 : index
    %c0_84 = arith.constant 0 : index
    %73 = vector.load %arg3[%c2_81, %c2_82, %c0_83, %c0_84] : memref<4x3x1x128xf32, #tpu.memory_space<vmem>>, vector<1x1x1x128xf32>
    %74 = vector.shape_cast %73 : vector<1x1x1x128xf32> to vector<1x128xf32>
    %75 = vector.broadcast %74 : vector<1x128xf32> to vector<8x128xf32>
    %76 = arith.addf %72, %75 : vector<8x128xf32>
    %c24_85 = arith.constant 24 : index
    %c0_86 = arith.constant 0 : index
    %77 = vector.load %arg4[%c24_85, %c0_86] : memref<40x128xf32, #tpu.memory_space<vmem>>, vector<8x128xf32>
    tpu.vector_store %arg4[%c24_85, %c0_86], %76 {strides = array<i32>} : memref<40x128xf32, #tpu.memory_space<vmem>>, vector<8x128xf32>,
    %c32 = arith.constant 32 : index
    %c0_87 = arith.constant 0 : index
    %78 = vector.load %arg1[%c32, %c0_87] : memref<40x128xf32, #tpu.memory_space<vmem>>, vector<8x128xf32>
    %79 = arith.truncf %78 : vector<8x128xf32> to vector<8x128xbf16>
    %c3 = arith.constant 3 : index
    %c0_88 = arith.constant 0 : index
    %c0_89 = arith.constant 0 : index
    %c0_90 = arith.constant 0 : index
    %80 = vector.load %arg2[%c3, %c0_88, %c0_89, %c0_90] : memref<4x3x128x128xbf16, #tpu.memory_space<vmem>>, vector<1x1x128x128xbf16>
    %81 = vector.shape_cast %80 : vector<1x1x128x128xbf16> to vector<128x128xbf16>
    %cst_91 = arith.constant dense<0.000000e+00> : vector<8x128xf32>
    %82 = tpu.matmul %79, %81, %cst_91 {dimension_numbers = #tpu.dot_dimension_numbers<[1], [0], [0], [1], [0, 0, 1, 1], [], []>} : vector<8x128xbf16>, vector<128x128xbf16>, vector<8x128xf32> -> vector<8x128xf32>
    %c3_92 = arith.constant 3 : index
    %c0_93 = arith.constant 0 : index
    %c0_94 = arith.constant 0 : index
    %c0_95 = arith.constant 0 : index
    %83 = vector.load %arg3[%c3_92, %c0_93, %c0_94, %c0_95] : memref<4x3x1x128xf32, #tpu.memory_space<vmem>>, vector<1x1x1x128xf32>
    %84 = vector.shape_cast %83 : vector<1x1x1x128xf32> to vector<1x128xf32>
    %85 = vector.broadcast %84 : vector<1x128xf32> to vector<8x128xf32>
    %86 = arith.addf %82, %85 : vector<8x128xf32>
    %87 = arith.truncf %86 : vector<8x128xf32> to vector<8x128xbf16>
    %c3_96 = arith.constant 3 : index
    %c1_97 = arith.constant 1 : index
    %c0_98 = arith.constant 0 : index
    %c0_99 = arith.constant 0 : index
    %88 = vector.load %arg2[%c3_96, %c1_97, %c0_98, %c0_99] : memref<4x3x128x128xbf16, #tpu.memory_space<vmem>>, vector<1x1x128x128xbf16>
    %89 = vector.shape_cast %88 : vector<1x1x128x128xbf16> to vector<128x128xbf16>
    %cst_100 = arith.constant dense<0.000000e+00> : vector<8x128xf32>
    %90 = tpu.matmul %87, %89, %cst_100 {dimension_numbers = #tpu.dot_dimension_numbers<[1], [0], [0], [1], [0, 0, 1, 1], [], []>} : vector<8x128xbf16>, vector<128x128xbf16>, vector<8x128xf32> -> vector<8x128xf32>
    %c3_101 = arith.constant 3 : index
    %c1_102 = arith.constant 1 : index
    %c0_103 = arith.constant 0 : index
    %c0_104 = arith.constant 0 : index
    %91 = vector.load %arg3[%c3_101, %c1_102, %c0_103, %c0_104] : memref<4x3x1x128xf32, #tpu.memory_space<vmem>>, vector<1x1x1x128xf32>
    %92 = vector.shape_cast %91 : vector<1x1x1x128xf32> to vector<1x128xf32>
    %93 = vector.broadcast %92 : vector<1x128xf32> to vector<8x128xf32>
    %94 = arith.addf %90, %93 : vector<8x128xf32>
    %95 = arith.truncf %94 : vector<8x128xf32> to vector<8x128xbf16>
    %c3_105 = arith.constant 3 : index
    %c2_106 = arith.constant 2 : index
    %c0_107 = arith.constant 0 : index
    %c0_108 = arith.constant 0 : index
    %96 = vector.load %arg2[%c3_105, %c2_106, %c0_107, %c0_108] : memref<4x3x128x128xbf16, #tpu.memory_space<vmem>>, vector<1x1x128x128xbf16>
    %97 = vector.shape_cast %96 : vector<1x1x128x128xbf16> to vector<128x128xbf16>
    %cst_109 = arith.constant dense<0.000000e+00> : vector<8x128xf32>
    %98 = tpu.matmul %95, %97, %cst_109 {dimension_numbers = #tpu.dot_dimension_numbers<[1], [0], [0], [1], [0, 0, 1, 1], [], []>} : vector<8x128xbf16>, vector<128x128xbf16>, vector<8x128xf32> -> vector<8x128xf32>
    %c3_110 = arith.constant 3 : index
    %c2_111 = arith.constant 2 : index
    %c0_112 = arith.constant 0 : index
    %c0_113 = arith.constant 0 : index
    %99 = vector.load %arg3[%c3_110, %c2_111, %c0_112, %c0_113] : memref<4x3x1x128xf32, #tpu.memory_space<vmem>>, vector<1x1x1x128xf32>
    %100 = vector.shape_cast %99 : vector<1x1x1x128xf32> to vector<1x128xf32>
    %101 = vector.broadcast %100 : vector<1x128xf32> to vector<8x128xf32>
    %102 = arith.addf %98, %101 : vector<8x128xf32>
    %c32_114 = arith.constant 32 : index
    %c0_115 = arith.constant 0 : index
    %103 = vector.load %arg4[%c32_114, %c0_115] : memref<40x128xf32, #tpu.memory_space<vmem>>, vector<8x128xf32>
    tpu.vector_store %arg4[%c32_114, %c0_115], %102 {strides = array<i32>} : memref<40x128xf32, #tpu.memory_space<vmem>>, vector<8x128xf32>,
    return
  }
  func.func @transform_0(%arg0: i32) -> (i32, i32) {
    %c0_i32 = arith.constant 0 : i32
    %c0_i32_0 = arith.constant 0 : i32
    %c0_i32_1 = arith.constant 0 : i32
    return %c0_i32, %c0_i32_0 : i32, i32
  }
  func.func @transform_1(%arg0: i32) -> (i32, i32, i32, i32) {
    %c0_i32 = arith.constant 0 : i32
    %c0_i32_0 = arith.constant 0 : i32
    %c0_i32_1 = arith.constant 0 : i32
    %c0_i32_2 = arith.constant 0 : i32
    %c0_i32_3 = arith.constant 0 : i32
    return %c0_i32, %c0_i32_0, %c0_i32_1, %c0_i32_2 : i32, i32, i32, i32
  }
  func.func @transform_2(%arg0: i32) -> (i32, i32, i32, i32) {
    %c0_i32 = arith.constant 0 : i32
    %c0_i32_0 = arith.constant 0 : i32
    %c0_i32_1 = arith.constant 0 : i32
    %c0_i32_2 = arith.constant 0 : i32
    %c0_i32_3 = arith.constant 0 : i32
    return %c0_i32, %c0_i32_0, %c0_i32_1, %c0_i32_2 : i32, i32, i32, i32
  }
  func.func @transform_3(%arg0: i32) -> (i32, i32) {
    %c0_i32 = arith.constant 0 : i32
    %c0_i32_0 = arith.constant 0 : i32
    %c0_i32_1 = arith.constant 0 : i32
    return %c0_i32, %c0_i32_0 : i32, i32
  }
}

</mosaic_0001>

<llo_original>
// kernel: tpu_custom_call.1
$region0: #{tpu_custom_call.1}
  #allocation0 [shape = 'u32[]', space=smem, size = 0x4, offset = 0x4, fixed_abs, tag = 'smem constant byte address 0x4 - core index']
  #allocation1 [shape = 'u32[144,128]{1,0:T(1,128)}', space=vmem, size = 0x12000, scoped, tag = 'internal scratch']
  %s0 = inlined_call_operand.hbm [shape: f32[40,128], index: 0, kind: input, shape index: {}]
  %s1 = inlined_call_operand.hbm [shape: bf16[4,3,128,128], index: 1, kind: input, shape index: {}]
  %s2 = inlined_call_operand.hbm [shape: f32[4,3,1,128], index: 2, kind: input, shape index: {}]
  %s3 = inlined_call_operand.hbm [shape: f32[40,128], index: 3, kind: output, shape index: {}]
  %s4 = sld [smem:[#allocation0]]
  $region34: #{tpu_custom_call.1} parent=0
    _
  %s6 = ssub.s32 1, %s4
  %s7 = scalar_select 0, %s6, %s4
  $region1: #{tpu_custom_call.1} parent=0
    #allocation2 [shape = 'u8[20480]{0}', space=vmem, size = 0x5000, scoped, tag = 'input window, operand 0, single buffered']
    #allocation3 [shape = 's32[1]{0}', space=sflag, size = 0x4, scoped, tag = 'scoped memory for tpu_custom_call.1']
    #allocation4 [shape = 's32[1]{0}', space=sflag, size = 0x4, scoped, tag = 'scoped memory for tpu_custom_call.1']
    #allocation5 [shape = 'u8[393216]{0}', space=vmem, size = 0x60000, scoped, tag = 'input window, operand 1, single buffered']
    #allocation6 [shape = 's32[1]{0}', space=sflag, size = 0x4, scoped, tag = 'scoped memory for tpu_custom_call.1']
    #allocation7 [shape = 'u8[6144]{0}', space=vmem, size = 0x1800, scoped, tag = 'input window, operand 2, single buffered']
    #allocation8 [shape = 'u8[20480]{0}', space=vmem, size = 0x5000, scoped, tag = 'output window, operand 0, single buffered']
    %8 = vsyncpa [#allocation3], 0
    %9 = vsyncpa [#allocation6], 0
    %10 = vsyncpa [#allocation4], 0
    // Predicated region
    $region2: #{tpu_custom_call.1} parent=1 // pred_check
      _
    $region3: #{tpu_custom_call.1} parent=1 // pred_check_branch
      %12 = sbr.rel (0) target = $region5
    $region4: #{tpu_custom_call.1} parent=1 // pred_region
      %s14 = ssub.s32 640, 640
      %15 = vsyncadd [#allocation3], %s14
      %s16 = sshll.u32 [#allocation2], 4
      %s17 = int_to_ptr.vmem [resolvable:$true] %s16
      %22 = dma.hbm_to_vmem [thread:$0]  %s0, 640, %s17, [#allocation3], 128, 128, 8
    $region5: #{tpu_custom_call.1} parent=1 // pred_fallthru
      _
    // Predicated region
    $region6: #{tpu_custom_call.1} parent=1 // pred_check
      _
    $region7: #{tpu_custom_call.1} parent=1 // pred_check_branch
      %24 = sbr.rel (0) target = $region9
    $region8: #{tpu_custom_call.1} parent=1 // pred_region
      %s26 = ssub.s32 12288, 12288
      %27 = vsyncadd [#allocation6], %s26
      %s28 = sshll.u32 [#allocation5], 4
      %s29 = int_to_ptr.vmem [resolvable:$true] %s28
      %34 = dma.hbm_to_vmem [thread:$0]  %s1, 12288, %s29, [#allocation6], 64, 64, 4
    $region9: #{tpu_custom_call.1} parent=1 // pred_fallthru
      _
    // Predicated region
    $region10: #{tpu_custom_call.1} parent=1 // pred_check
      _
    $region11: #{tpu_custom_call.1} parent=1 // pred_check_branch
      %36 = sbr.rel (0) target = $region13
    $region12: #{tpu_custom_call.1} parent=1 // pred_region
      %s38 = ssub.s32 192, 192
      %39 = vsyncadd [#allocation6], %s38
      %s40 = sshll.u32 [#allocation7], 4
      %s41 = int_to_ptr.vmem [resolvable:$true] %s40
      %46 = dma.hbm_to_vmem [thread:$0]  %s2, 192, %s41, [#allocation6], 16, 16, 1
    $region13: #{tpu_custom_call.1} parent=1 // pred_fallthru
      _
    // Predicated region
    $region14: #{tpu_custom_call.1} parent=1 // pred_check
      _
    $region15: #{tpu_custom_call.1} parent=1 // pred_check_branch
      %48 = sbr.rel (0) target = $region17
    $region16: #{tpu_custom_call.1} parent=1 // pred_region
      %49 = dma.done [#allocation3], 640
    $region17: #{tpu_custom_call.1} parent=1 // pred_fallthru
      _
    // Predicated region
    $region18: #{tpu_custom_call.1} parent=1 // pred_check
      _
    $region19: #{tpu_custom_call.1} parent=1 // pred_check_branch
      %51 = sbr.rel (0) target = $region21
    $region20: #{tpu_custom_call.1} parent=1 // pred_region
      %52 = dma.done [#allocation6], 12288
    $region21: #{tpu_custom_call.1} parent=1 // pred_fallthru
      _
    // Predicated region
    $region22: #{tpu_custom_call.1} parent=1 // pred_check
      _
    $region23: #{tpu_custom_call.1} parent=1 // pred_check_branch
      %54 = sbr.rel (0) target = $region25
    $region24: #{tpu_custom_call.1} parent=1 // pred_region
      %55 = dma.done [#allocation6], 192
    $region25: #{tpu_custom_call.1} parent=1 // pred_fallthru
      _
    %v57 = vld [vmem:[#allocation2] sm:$0xff]
    %v58 = vld [vmem:[#allocation2 + $0x8] sm:$0xff]
    %v59 = vpack.c.bf16 %v58, %v57
    %v60 = vld [vmem:[#allocation5] sm:$0xf]
    %v61 = vld [vmem:[#allocation5 + $0x4] sm:$0xf]
    %v62 = vld [vmem:[#allocation5 + $0x8] sm:$0xf]
    %v63 = vld [vmem:[#allocation5 + $0xc] sm:$0xf]
    %v64 = vld [vmem:[#allocation5 + $0x10] sm:$0xf]
    %v65 = vld [vmem:[#allocation5 + $0x14] sm:$0xf]
    %v66 = vld [vmem:[#allocation5 + $0x18] sm:$0xf]
    %v67 = vld [vmem:[#allocation5 + $0x1c] sm:$0xf]
    %v68 = vld [vmem:[#allocation5 + $0x20] sm:$0xf]
    %v69 = vld [vmem:[#allocation5 + $0x24] sm:$0xf]
    %v70 = vld [vmem:[#allocation5 + $0x28] sm:$0xf]
    %v71 = vld [vmem:[#allocation5 + $0x2c] sm:$0xf]
    %v72 = vld [vmem:[#allocation5 + $0x30] sm:$0xf]
    %v73 = vld [vmem:[#allocation5 + $0x34] sm:$0xf]
    %v74 = vld [vmem:[#allocation5 + $0x38] sm:$0xf]
    %v75 = vld [vmem:[#allocation5 + $0x3c] sm:$0xf]
    %v76 = vld [vmem:[#allocation7] sm:$0x1]
    %v78 = vlaneseq
    %v79 = vshrl.u32 %v78, 7
    %v80 = vsub.s32 0, %v79
    %v81 = vrot.slane %v76, %v80
    %v99 = vunpack.c.l.b16 %v60
    %v100 = vunpack.c.l.b16 %v61
    %v101 = vunpack.c.l.b16 %v62
    %v102 = vunpack.c.l.b16 %v63
    %v103 = vunpack.c.l.b16 %v64
    %v104 = vunpack.c.l.b16 %v65
    %v105 = vunpack.c.l.b16 %v66
    %v106 = vunpack.c.l.b16 %v67
    %v107 = vunpack.c.l.b16 %v68
    %v108 = vunpack.c.l.b16 %v69
    %v109 = vunpack.c.l.b16 %v70
    %v110 = vunpack.c.l.b16 %v71
    %v111 = vunpack.c.l.b16 %v72
    %v112 = vunpack.c.l.b16 %v73
    %v113 = vunpack.c.l.b16 %v74
    %v114 = vunpack.c.l.b16 %v75
    %v115 = vpack.c.b16 %v100, %v99
    %v116 = vpack.c.b16 %v102, %v101
    %v117 = vpack.c.b16 %v104, %v103
    %v118 = vpack.c.b16 %v106, %v105
    %v119 = vpack.c.b16 %v108, %v107
    %v120 = vpack.c.b16 %v110, %v109
    %v121 = vpack.c.b16 %v112, %v111
    %v122 = vpack.c.b16 %v114, %v113
    %131 = vmatprep.subr.bf16.mxu0 0
    %132 = vmatpush1.bf16.msra.mxu0 %v115
    %133 = vmatprep.subr.bf16.mxu0 0
    %134 = vmatpush1.bf16.msra.mxu0 %v116
    %135 = vmatprep.subr.bf16.mxu0 0
    %136 = vmatpush1.bf16.msra.mxu0 %v117
    %137 = vmatprep.subr.bf16.mxu0 0
    %138 = vmatpush1.bf16.msra.mxu0 %v118
    %139 = vmatprep.subr.bf16.mxu0 0
    %140 = vmatpush1.bf16.msra.mxu0 %v119
    %141 = vmatprep.subr.bf16.mxu0 0
    %142 = vmatpush1.bf16.msra.mxu0 %v120
    %143 = vmatprep.subr.bf16.mxu0 0
    %144 = vmatpush1.bf16.msra.mxu0 %v121
    %145 = vmatprep.subr.bf16.mxu0 0
    %146 = vmatpush1.bf16.msra.mxu0 %v122
    %147 = vmatprep.subr.bf16.mxu0 0
    %148 = vmatpush1.bf16.msra.mxu0 0
    %149 = vmatprep.subr.bf16.mxu0 0
    %150 = vmatpush1.bf16.msra.mxu0 0
    %151 = vmatprep.subr.bf16.mxu0 0
    %152 = vmatpush1.bf16.msra.mxu0 0
    %153 = vmatprep.subr.bf16.mxu0 0
    %154 = vmatpush1.bf16.msra.mxu0 0
    %155 = vmatprep.subr.bf16.mxu0 0
    %156 = vmatpush1.bf16.msra.mxu0 0
    %157 = vmatprep.subr.bf16.mxu0 0
    %158 = vmatpush1.bf16.msra.mxu0 0
    %159 = vmatprep.subr.bf16.mxu0 0
    %160 = vmatpush1.bf16.msra.mxu0 0
    %161 = vmatprep.subr.bf16.mxu0 0
    %162 = vmatpush1.bf16.msra.mxu0 0
    %163 = vmatprep.mubr.bf16.mxu0 0
    %164 = vmatmul.mubr.bf16.gmra.mrb[0].mxu0 %v59
    %v165 = vpop.f32.mrb[0].mxu0
    %v166 = vadd.f32 %v81, %v165
    %v167 = vpop.f32.mrb[0].mxu0
    %v168 = vpop.f32.mrb[0].mxu0
    %v169 = vadd.f32 %v81, %v168
    %v170 = vpop.f32.mrb[0].mxu0
    %171 = vdwg.mxu0
    %v172 = vpack.c.bf16 %v169, %v166
    %s173 = scalar_lea.vmem [#allocation5], 64
    %v174 = vld [vmem:[%s173] sm:$0xf]
    %v175 = vld [vmem:[%s173 + $0x4] sm:$0xf]
    %v176 = vld [vmem:[%s173 + $0x8] sm:$0xf]
    %v177 = vld [vmem:[%s173 + $0xc] sm:$0xf]
    %v178 = vld [vmem:[%s173 + $0x10] sm:$0xf]
    %v179 = vld [vmem:[%s173 + $0x14] sm:$0xf]
    %v180 = vld [vmem:[%s173 + $0x18] sm:$0xf]
    %v181 = vld [vmem:[%s173 + $0x1c] sm:$0xf]
    %v182 = vld [vmem:[%s173 + $0x20] sm:$0xf]
    %v183 = vld [vmem:[%s173 + $0x24] sm:$0xf]
    %v184 = vld [vmem:[%s173 + $0x28] sm:$0xf]
    %v185 = vld [vmem:[%s173 + $0x2c] sm:$0xf]
    %v186 = vld [vmem:[%s173 + $0x30] sm:$0xf]
    %v187 = vld [vmem:[%s173 + $0x34] sm:$0xf]
    %v188 = vld [vmem:[%s173 + $0x38] sm:$0xf]
    %v189 = vld [vmem:[%s173 + $0x3c] sm:$0xf]
    %s190 = scalar_lea.vmem [#allocation7], 1
    %v191 = vld [vmem:[%s190] sm:$0x1]
    %v193 = vlaneseq
    %v194 = vshrl.u32 %v193, 7
    %v195 = vsub.s32 0, %v194
    %v196 = vrot.slane %v191, %v195
    %v214 = vunpack.c.l.b16 %v174
    %v215 = vunpack.c.l.b16 %v175
    %v216 = vunpack.c.l.b16 %v176
    %v217 = vunpack.c.l.b16 %v177
    %v218 = vunpack.c.l.b16 %v178
    %v219 = vunpack.c.l.b16 %v179
    %v220 = vunpack.c.l.b16 %v180
    %v221 = vunpack.c.l.b16 %v181
    %v222 = vunpack.c.l.b16 %v182
    %v223 = vunpack.c.l.b16 %v183
    %v224 = vunpack.c.l.b16 %v184
    %v225 = vunpack.c.l.b16 %v185
    %v226 = vunpack.c.l.b16 %v186
    %v227 = vunpack.c.l.b16 %v187
    %v228 = vunpack.c.l.b16 %v188
    %v229 = vunpack.c.l.b16 %v189
    %v230 = vpack.c.b16 %v215, %v214
    %v231 = vpack.c.b16 %v217, %v216
    %v232 = vpack.c.b16 %v219, %v218
    %v233 = vpack.c.b16 %v221, %v220
    %v234 = vpack.c.b16 %v223, %v222
    %v235 = vpack.c.b16 %v225, %v224
    %v236 = vpack.c.b16 %v227, %v226
    %v237 = vpack.c.b16 %v229, %v228
    %246 = vmatprep.subr.bf16.mxu0 0
    %247 = vmatpush1.bf16.msra.mxu0 %v230
    %248 = vmatprep.subr.bf16.mxu0 0
    %249 = vmatpush1.bf16.msra.mxu0 %v231
    %250 = vmatprep.subr.bf16.mxu0 0
    %251 = vmatpush1.bf16.msra.mxu0 %v232
    %252 = vmatprep.subr.bf16.mxu0 0
    %253 = vmatpush1.bf16.msra.mxu0 %v233
    %254 = vmatprep.subr.bf16.mxu0 0
    %255 = vmatpush1.bf16.msra.mxu0 %v234
    %256 = vmatprep.subr.bf16.mxu0 0
    %257 = vmatpush1.bf16.msra.mxu0 %v235
    %258 = vmatprep.subr.bf16.mxu0 0
    %259 = vmatpush1.bf16.msra.mxu0 %v236
    %260 = vmatprep.subr.bf16.mxu0 0
    %261 = vmatpush1.bf16.msra.mxu0 %v237
    %262 = vmatprep.subr.bf16.mxu0 0
    %263 = vmatpush1.bf16.msra.mxu0 0
    %264 = vmatprep.subr.bf16.mxu0 0
    %265 = vmatpush1.bf16.msra.mxu0 0
    %266 = vmatprep.subr.bf16.mxu0 0
    %267 = vmatpush1.bf16.msra.mxu0 0
    %268 = vmatprep.subr.bf16.mxu0 0
    %269 = vmatpush1.bf16.msra.mxu0 0
    %270 = vmatprep.subr.bf16.mxu0 0
    %271 = vmatpush1.bf16.msra.mxu0 0
    %272 = vmatprep.subr.bf16.mxu0 0
    %273 = vmatpush1.bf16.msra.mxu0 0
    %274 = vmatprep.subr.bf16.mxu0 0
    %275 = vmatpush1.bf16.msra.mxu0 0
    %276 = vmatprep.subr.bf16.mxu0 0
    %277 = vmatpush1.bf16.msra.mxu0 0
    %278 = vmatprep.mubr.bf16.mxu0 0
    %279 = vmatmul.mubr.bf16.gmra.mrb[0].mxu0 %v172
    %v280 = vpop.f32.mrb[0].mxu0
    %v281 = vadd.f32 %v196, %v280
    %v282 = vpop.f32.mrb[0].mxu0
    %v283 = vpop.f32.mrb[0].mxu0
    %v284 = vadd.f32 %v196, %v283
    %v285 = vpop.f32.mrb[0].mxu0
    %286 = vdwg.mxu0
    %v287 = vpack.c.bf16 %v284, %v281
    %s288 = scalar_lea.vmem [#allocation5], 128
    %v289 = vld [vmem:[%s288] sm:$0xf]
    %v290 = vld [vmem:[%s288 + $0x4] sm:$0xf]
    %v291 = vld [vmem:[%s288 + $0x8] sm:$0xf]
    %v292 = vld [vmem:[%s288 + $0xc] sm:$0xf]
    %v293 = vld [vmem:[%s288 + $0x10] sm:$0xf]
    %v294 = vld [vmem:[%s288 + $0x14] sm:$0xf]
    %v295 = vld [vmem:[%s288 + $0x18] sm:$0xf]
    %v296 = vld [vmem:[%s288 + $0x1c] sm:$0xf]
    %v297 = vld [vmem:[%s288 + $0x20] sm:$0xf]
    %v298 = vld [vmem:[%s288 + $0x24] sm:$0xf]
    %v299 = vld [vmem:[%s288 + $0x28] sm:$0xf]
    %v300 = vld [vmem:[%s288 + $0x2c] sm:$0xf]
    %v301 = vld [vmem:[%s288 + $0x30] sm:$0xf]
    %v302 = vld [vmem:[%s288 + $0x34] sm:$0xf]
    %v303 = vld [vmem:[%s288 + $0x38] sm:$0xf]
    %v304 = vld [vmem:[%s288 + $0x3c] sm:$0xf]
    %s305 = scalar_lea.vmem [#allocation7], 2
    %v306 = vld [vmem:[%s305] sm:$0x1]
    %v308 = vlaneseq
    %v309 = vshrl.u32 %v308, 7
    %v310 = vsub.s32 0, %v309
    %v311 = vrot.slane %v306, %v310
    %v329 = vunpack.c.l.b16 %v289
    %v330 = vunpack.c.l.b16 %v290
    %v331 = vunpack.c.l.b16 %v291
    %v332 = vunpack.c.l.b16 %v292
    %v333 = vunpack.c.l.b16 %v293
    %v334 = vunpack.c.l.b16 %v294
    %v335 = vunpack.c.l.b16 %v295
    %v336 = vunpack.c.l.b16 %v296
    %v337 = vunpack.c.l.b16 %v297
    %v338 = vunpack.c.l.b16 %v298
    %v339 = vunpack.c.l.b16 %v299
    %v340 = vunpack.c.l.b16 %v300
    %v341 = vunpack.c.l.b16 %v301
    %v342 = vunpack.c.l.b16 %v302
    %v343 = vunpack.c.l.b16 %v303
    %v344 = vunpack.c.l.b16 %v304
    %v345 = vpack.c.b16 %v330, %v329
    %v346 = vpack.c.b16 %v332, %v331
    %v347 = vpack.c.b16 %v334, %v333
    %v348 = vpack.c.b16 %v336, %v335
    %v349 = vpack.c.b16 %v338, %v337
    %v350 = vpack.c.b16 %v340, %v339
    %v351 = vpack.c.b16 %v342, %v341
    %v352 = vpack.c.b16 %v344, %v343
    %361 = vmatprep.subr.bf16.mxu0 0
    %362 = vmatpush1.bf16.msra.mxu0 %v345
    %363 = vmatprep.subr.bf16.mxu0 0
    %364 = vmatpush1.bf16.msra.mxu0 %v346
    %365 = vmatprep.subr.bf16.mxu0 0
    %366 = vmatpush1.bf16.msra.mxu0 %v347
    %367 = vmatprep.subr.bf16.mxu0 0
    %368 = vmatpush1.bf16.msra.mxu0 %v348
    %369 = vmatprep.subr.bf16.mxu0 0
    %370 = vmatpush1.bf16.msra.mxu0 %v349
    %371 = vmatprep.subr.bf16.mxu0 0
    %372 = vmatpush1.bf16.msra.mxu0 %v350
    %373 = vmatprep.subr.bf16.mxu0 0
    %374 = vmatpush1.bf16.msra.mxu0 %v351
    %375 = vmatprep.subr.bf16.mxu0 0
    %376 = vmatpush1.bf16.msra.mxu0 %v352
    %377 = vmatprep.subr.bf16.mxu0 0
    %378 = vmatpush1.bf16.msra.mxu0 0
    %379 = vmatprep.subr.bf16.mxu0 0
    %380 = vmatpush1.bf16.msra.mxu0 0
    %381 = vmatprep.subr.bf16.mxu0 0
    %382 = vmatpush1.bf16.msra.mxu0 0
    %383 = vmatprep.subr.bf16.mxu0 0
    %384 = vmatpush1.bf16.msra.mxu0 0
    %385 = vmatprep.subr.bf16.mxu0 0
    %386 = vmatpush1.bf16.msra.mxu0 0
    %387 = vmatprep.subr.bf16.mxu0 0
    %388 = vmatpush1.bf16.msra.mxu0 0
    %389 = vmatprep.subr.bf16.mxu0 0
    %390 = vmatpush1.bf16.msra.mxu0 0
    %391 = vmatprep.subr.bf16.mxu0 0
    %392 = vmatpush1.bf16.msra.mxu0 0
    %393 = vmatprep.mubr.bf16.mxu0 0
    %394 = vmatmul.mubr.bf16.gmra.mrb[0].mxu0 %v287
    %v395 = vpop.f32.mrb[0].mxu0
    %v396 = vadd.f32 %v311, %v395
    %v397 = vpop.f32.mrb[0].mxu0
    %v398 = vpop.f32.mrb[0].mxu0
    %v399 = vadd.f32 %v311, %v398
    %v400 = vpop.f32.mrb[0].mxu0
    %401 = vdwg.mxu0
    %402 = vst [vmem:[#allocation8] sm:$0xff] %v396
    %403 = vst [vmem:[#allocation8 + $0x8] sm:$0xff] %v399
    %v404 = vld [vmem:[#allocation2 + $0x10] sm:$0xff]
    %v405 = vpack.c.bf16 %v404, %v404
    %s406 = scalar_lea.vmem [#allocation5], 192
    %v407 = vld [vmem:[%s406] sm:$0xf]
    %v408 = vld [vmem:[%s406 + $0x4] sm:$0xf]
    %v409 = vld [vmem:[%s406 + $0x8] sm:$0xf]
    %v410 = vld [vmem:[%s406 + $0xc] sm:$0xf]
    %v411 = vld [vmem:[%s406 + $0x10] sm:$0xf]
    %v412 = vld [vmem:[%s406 + $0x14] sm:$0xf]
    %v413 = vld [vmem:[%s406 + $0x18] sm:$0xf]
    %v414 = vld [vmem:[%s406 + $0x1c] sm:$0xf]
    %v415 = vld [vmem:[%s406 + $0x20] sm:$0xf]
    %v416 = vld [vmem:[%s406 + $0x24] sm:$0xf]
    %v417 = vld [vmem:[%s406 + $0x28] sm:$0xf]
    %v418 = vld [vmem:[%s406 + $0x2c] sm:$0xf]
    %v419 = vld [vmem:[%s406 + $0x30] sm:$0xf]
    %v420 = vld [vmem:[%s406 + $0x34] sm:$0xf]
    %v421 = vld [vmem:[%s406 + $0x38] sm:$0xf]
    %v422 = vld [vmem:[%s406 + $0x3c] sm:$0xf]
    %s423 = scalar_lea.vmem [#allocation7], 3
    %v424 = vld [vmem:[%s423] sm:$0x1]
    %v426 = vlaneseq
    %v427 = vshrl.u32 %v426, 7
    %v428 = vsub.s32 0, %v427
    %v429 = vrot.slane %v424, %v428
    %v447 = vunpack.c.l.b16 %v407
    %v448 = vunpack.c.l.b16 %v408
    %v449 = vunpack.c.l.b16 %v409
    %v450 = vunpack.c.l.b16 %v410
    %v451 = vunpack.c.l.b16 %v411
    %v452 = vunpack.c.l.b16 %v412
    %v453 = vunpack.c.l.b16 %v413
    %v454 = vunpack.c.l.b16 %v414
    %v455 = vunpack.c.l.b16 %v415
    %v456 = vunpack.c.l.b16 %v416
    %v457 = vunpack.c.l.b16 %v417
    %v458 = vunpack.c.l.b16 %v418
    %v459 = vunpack.c.l.b16 %v419
    %v460 = vunpack.c.l.b16 %v420
    %v461 = vunpack.c.l.b16 %v421
    %v462 = vunpack.c.l.b16 %v422
    %v463 = vpack.c.b16 %v448, %v447
    %v464 = vpack.c.b16 %v450, %v449
    %v465 = vpack.c.b16 %v452, %v451
    %v466 = vpack.c.b16 %v454, %v453
    %v467 = vpack.c.b16 %v456, %v455
    %v468 = vpack.c.b16 %v458, %v457
    %v469 = vpack.c.b16 %v460, %v459
    %v470 = vpack.c.b16 %v462, %v461
    %479 = vmatprep.subr.bf16.mxu0 0
    %480 = vmatpush1.bf16.msra.mxu0 %v463
    %481 = vmatprep.subr.bf16.mxu0 0
    %482 = vmatpush1.bf16.msra.mxu0 %v464
    %483 = vmatprep.subr.bf16.mxu0 0
    %484 = vmatpush1.bf16.msra.mxu0 %v465
    %485 = vmatprep.subr.bf16.mxu0 0
    %486 = vmatpush1.bf16.msra.mxu0 %v466
    %487 = vmatprep.subr.bf16.mxu0 0
    %488 = vmatpush1.bf16.msra.mxu0 %v467
    %489 = vmatprep.subr.bf16.mxu0 0
    %490 = vmatpush1.bf16.msra.mxu0 %v468
    %491 = vmatprep.subr.bf16.mxu0 0
    %492 = vmatpush1.bf16.msra.mxu0 %v469
    %493 = vmatprep.subr.bf16.mxu0 0
    %494 = vmatpush1.bf16.msra.mxu0 %v470
    %495 = vmatprep.subr.bf16.mxu0 0
    %496 = vmatpush1.bf16.msra.mxu0 0
    %497 = vmatprep.subr.bf16.mxu0 0
    %498 = vmatpush1.bf16.msra.mxu0 0
    %499 = vmatprep.subr.bf16.mxu0 0
    %500 = vmatpush1.bf16.msra.mxu0 0
    %501 = vmatprep.subr.bf16.mxu0 0
    %502 = vmatpush1.bf16.msra.mxu0 0
    %503 = vmatprep.subr.bf16.mxu0 0
    %504 = vmatpush1.bf16.msra.mxu0 0
    %505 = vmatprep.subr.bf16.mxu0 0
    %506 = vmatpush1.bf16.msra.mxu0 0
    %507 = vmatprep.subr.bf16.mxu0 0
    %508 = vmatpush1.bf16.msra.mxu0 0
    %509 = vmatprep.subr.bf16.mxu0 0
    %510 = vmatpush1.bf16.msra.mxu0 0
    %511 = vmatprep.mubr.bf16.mxu0 0
    %512 = vmatmul.mubr.bf16.gmra.mrb[0].mxu0 %v405
    %v513 = vpop.f32.mrb[0].mxu0
    %v514 = vadd.f32 %v429, %v513
    %v515 = vpop.f32.mrb[0].mxu0
    %v516 = vpop.f32.mrb[0].mxu0
    %v517 = vpop.f32.mrb[0].mxu0
    %518 = vdwg.mxu0
    %v519 = vpack.c.bf16 %v514, %v514
    %s520 = scalar_lea.vmem [#allocation5], 256
    %v521 = vld [vmem:[%s520] sm:$0xf]
    %v522 = vld [vmem:[%s520 + $0x4] sm:$0xf]
    %v523 = vld [vmem:[%s520 + $0x8] sm:$0xf]
    %v524 = vld [vmem:[%s520 + $0xc] sm:$0xf]
    %v525 = vld [vmem:[%s520 + $0x10] sm:$0xf]
    %v526 = vld [vmem:[%s520 + $0x14] sm:$0xf]
    %v527 = vld [vmem:[%s520 + $0x18] sm:$0xf]
    %v528 = vld [vmem:[%s520 + $0x1c] sm:$0xf]
    %v529 = vld [vmem:[%s520 + $0x20] sm:$0xf]
    %v530 = vld [vmem:[%s520 + $0x24] sm:$0xf]
    %v531 = vld [vmem:[%s520 + $0x28] sm:$0xf]
    %v532 = vld [vmem:[%s520 + $0x2c] sm:$0xf]
    %v533 = vld [vmem:[%s520 + $0x30] sm:$0xf]
    %v534 = vld [vmem:[%s520 + $0x34] sm:$0xf]
    %v535 = vld [vmem:[%s520 + $0x38] sm:$0xf]
    %v536 = vld [vmem:[%s520 + $0x3c] sm:$0xf]
    %s537 = scalar_lea.vmem [#allocation7], 4
    %v538 = vld [vmem:[%s537] sm:$0x1]
    %v540 = vlaneseq
    %v541 = vshrl.u32 %v540, 7
    %v542 = vsub.s32 0, %v541
    %v543 = vrot.slane %v538, %v542
    %v561 = vunpack.c.l.b16 %v521
    %v562 = vunpack.c.l.b16 %v522
    %v563 = vunpack.c.l.b16 %v523
    %v564 = vunpack.c.l.b16 %v524
    %v565 = vunpack.c.l.b16 %v525
    %v566 = vunpack.c.l.b16 %v526
    %v567 = vunpack.c.l.b16 %v527
    %v568 = vunpack.c.l.b16 %v528
    %v569 = vunpack.c.l.b16 %v529
    %v570 = vunpack.c.l.b16 %v530
    %v571 = vunpack.c.l.b16 %v531
    %v572 = vunpack.c.l.b16 %v532
    %v573 = vunpack.c.l.b16 %v533
    %v574 = vunpack.c.l.b16 %v534
    %v575 = vunpack.c.l.b16 %v535
    %v576 = vunpack.c.l.b16 %v536
    %v577 = vpack.c.b16 %v562, %v561
    %v578 = vpack.c.b16 %v564, %v563
    %v579 = vpack.c.b16 %v566, %v565
    %v580 = vpack.c.b16 %v568, %v567
    %v581 = vpack.c.b16 %v570, %v569
    %v582 = vpack.c.b16 %v572, %v571
    %v583 = vpack.c.b16 %v574, %v573
    %v584 = vpack.c.b16 %v576, %v575
    %593 = vmatprep.subr.bf16.mxu0 0
    %594 = vmatpush1.bf16.msra.mxu0 %v577
    %595 = vmatprep.subr.bf16.mxu0 0
    %596 = vmatpush1.bf16.msra.mxu0 %v578
    %597 = vmatprep.subr.bf16.mxu0 0
    %598 = vmatpush1.bf16.msra.mxu0 %v579
    %599 = vmatprep.subr.bf16.mxu0 0
    %600 = vmatpush1.bf16.msra.mxu0 %v580
    %601 = vmatprep.subr.bf16.mxu0 0
    %602 = vmatpush1.bf16.msra.mxu0 %v581
    %603 = vmatprep.subr.bf16.mxu0 0
    %604 = vmatpush1.bf16.msra.mxu0 %v582
    %605 = vmatprep.subr.bf16.mxu0 0
    %606 = vmatpush1.bf16.msra.mxu0 %v583
    %607 = vmatprep.subr.bf16.mxu0 0
    %608 = vmatpush1.bf16.msra.mxu0 %v584
    %609 = vmatprep.subr.bf16.mxu0 0
    %610 = vmatpush1.bf16.msra.mxu0 0
    %611 = vmatprep.subr.bf16.mxu0 0
    %612 = vmatpush1.bf16.msra.mxu0 0
    %613 = vmatprep.subr.bf16.mxu0 0
    %614 = vmatpush1.bf16.msra.mxu0 0
    %615 = vmatprep.subr.bf16.mxu0 0
    %616 = vmatpush1.bf16.msra.mxu0 0
    %617 = vmatprep.subr.bf16.mxu0 0
    %618 = vmatpush1.bf16.msra.mxu0 0
    %619 = vmatprep.subr.bf16.mxu0 0
    %620 = vmatpush1.bf16.msra.mxu0 0
    %621 = vmatprep.subr.bf16.mxu0 0
    %622 = vmatpush1.bf16.msra.mxu0 0
    %623 = vmatprep.subr.bf16.mxu0 0
    %624 = vmatpush1.bf16.msra.mxu0 0
    %625 = vmatprep.mubr.bf16.mxu0 0
    %626 = vmatmul.mubr.bf16.gmra.mrb[0].mxu0 %v519
    %v627 = vpop.f32.mrb[0].mxu0
    %v628 = vadd.f32 %v543, %v627
    %v629 = vpop.f32.mrb[0].mxu0
    %v630 = vpop.f32.mrb[0].mxu0
    %v631 = vpop.f32.mrb[0].mxu0
    %632 = vdwg.mxu0
    %v633 = vpack.c.bf16 %v628, %v628
    %s634 = scalar_lea.vmem [#allocation5], 320
    %v635 = vld [vmem:[%s634] sm:$0xf]
    %v636 = vld [vmem:[%s634 + $0x4] sm:$0xf]
    %v637 = vld [vmem:[%s634 + $0x8] sm:$0xf]
    %v638 = vld [vmem:[%s634 + $0xc] sm:$0xf]
    %v639 = vld [vmem:[%s634 + $0x10] sm:$0xf]
    %v640 = vld [vmem:[%s634 + $0x14] sm:$0xf]
    %v641 = vld [vmem:[%s634 + $0x18] sm:$0xf]
    %v642 = vld [vmem:[%s634 + $0x1c] sm:$0xf]
    %v643 = vld [vmem:[%s634 + $0x20] sm:$0xf]
    %v644 = vld [vmem:[%s634 + $0x24] sm:$0xf]
    %v645 = vld [vmem:[%s634 + $0x28] sm:$0xf]
    %v646 = vld [vmem:[%s634 + $0x2c] sm:$0xf]
    %v647 = vld [vmem:[%s634 + $0x30] sm:$0xf]
    %v648 = vld [vmem:[%s634 + $0x34] sm:$0xf]
    %v649 = vld [vmem:[%s634 + $0x38] sm:$0xf]
    %v650 = vld [vmem:[%s634 + $0x3c] sm:$0xf]
    %s651 = scalar_lea.vmem [#allocation7], 5
    %v652 = vld [vmem:[%s651] sm:$0x1]
    %v654 = vlaneseq
    %v655 = vshrl.u32 %v654, 7
    %v656 = vsub.s32 0, %v655
    %v657 = vrot.slane %v652, %v656
    %v675 = vunpack.c.l.b16 %v635
    %v676 = vunpack.c.l.b16 %v636
    %v677 = vunpack.c.l.b16 %v637
    %v678 = vunpack.c.l.b16 %v638
    %v679 = vunpack.c.l.b16 %v639
    %v680 = vunpack.c.l.b16 %v640
    %v681 = vunpack.c.l.b16 %v641
    %v682 = vunpack.c.l.b16 %v642
    %v683 = vunpack.c.l.b16 %v643
    %v684 = vunpack.c.l.b16 %v644
    %v685 = vunpack.c.l.b16 %v645
    %v686 = vunpack.c.l.b16 %v646
    %v687 = vunpack.c.l.b16 %v647
    %v688 = vunpack.c.l.b16 %v648
    %v689 = vunpack.c.l.b16 %v649
    %v690 = vunpack.c.l.b16 %v650
    %v691 = vpack.c.b16 %v676, %v675
    %v692 = vpack.c.b16 %v678, %v677
    %v693 = vpack.c.b16 %v680, %v679
    %v694 = vpack.c.b16 %v682, %v681
    %v695 = vpack.c.b16 %v684, %v683
    %v696 = vpack.c.b16 %v686, %v685
    %v697 = vpack.c.b16 %v688, %v687
    %v698 = vpack.c.b16 %v690, %v689
    %707 = vmatprep.subr.bf16.mxu0 0
    %708 = vmatpush1.bf16.msra.mxu0 %v691
    %709 = vmatprep.subr.bf16.mxu0 0
    %710 = vmatpush1.bf16.msra.mxu0 %v692
    %711 = vmatprep.subr.bf16.mxu0 0
    %712 = vmatpush1.bf16.msra.mxu0 %v693
    %713 = vmatprep.subr.bf16.mxu0 0
    %714 = vmatpush1.bf16.msra.mxu0 %v694
    %715 = vmatprep.subr.bf16.mxu0 0
    %716 = vmatpush1.bf16.msra.mxu0 %v695
    %717 = vmatprep.subr.bf16.mxu0 0
    %718 = vmatpush1.bf16.msra.mxu0 %v696
    %719 = vmatprep.subr.bf16.mxu0 0
    %720 = vmatpush1.bf16.msra.mxu0 %v697
    %721 = vmatprep.subr.bf16.mxu0 0
    %722 = vmatpush1.bf16.msra.mxu0 %v698
    %723 = vmatprep.subr.bf16.mxu0 0
    %724 = vmatpush1.bf16.msra.mxu0 0
    %725 = vmatprep.subr.bf16.mxu0 0
    %726 = vmatpush1.bf16.msra.mxu0 0
    %727 = vmatprep.subr.bf16.mxu0 0
    %728 = vmatpush1.bf16.msra.mxu0 0
    %729 = vmatprep.subr.bf16.mxu0 0
    %730 = vmatpush1.bf16.msra.mxu0 0
    %731 = vmatprep.subr.bf16.mxu0 0
    %732 = vmatpush1.bf16.msra.mxu0 0
    %733 = vmatprep.subr.bf16.mxu0 0
    %734 = vmatpush1.bf16.msra.mxu0 0
    %735 = vmatprep.subr.bf16.mxu0 0
    %736 = vmatpush1.bf16.msra.mxu0 0
    %737 = vmatprep.subr.bf16.mxu0 0
    %738 = vmatpush1.bf16.msra.mxu0 0
    %739 = vmatprep.mubr.bf16.mxu0 0
    %740 = vmatmul.mubr.bf16.gmra.mrb[0].mxu0 %v633
    %v741 = vpop.f32.mrb[0].mxu0
    %v742 = vadd.f32 %v657, %v741
    %v743 = vpop.f32.mrb[0].mxu0
    %v744 = vpop.f32.mrb[0].mxu0
    %v745 = vpop.f32.mrb[0].mxu0
    %746 = vdwg.mxu0
    %747 = vst [vmem:[#allocation8 + $0x10] sm:$0xff] %v742
    %v748 = vld [vmem:[#allocation2 + $0x18] sm:$0xff]
    %v749 = vpack.c.bf16 %v748, %v748
    %s750 = scalar_lea.vmem [#allocation5], 384
    %v751 = vld [vmem:[%s750] sm:$0xf]
    %v752 = vld [vmem:[%s750 + $0x4] sm:$0xf]
    %v753 = vld [vmem:[%s750 + $0x8] sm:$0xf]
    %v754 = vld [vmem:[%s750 + $0xc] sm:$0xf]
    %v755 = vld [vmem:[%s750 + $0x10] sm:$0xf]
    %v756 = vld [vmem:[%s750 + $0x14] sm:$0xf]
    %v757 = vld [vmem:[%s750 + $0x18] sm:$0xf]
    %v758 = vld [vmem:[%s750 + $0x1c] sm:$0xf]
    %v759 = vld [vmem:[%s750 + $0x20] sm:$0xf]
    %v760 = vld [vmem:[%s750 + $0x24] sm:$0xf]
    %v761 = vld [vmem:[%s750 + $0x28] sm:$0xf]
    %v762 = vld [vmem:[%s750 + $0x2c] sm:$0xf]
    %v763 = vld [vmem:[%s750 + $0x30] sm:$0xf]
    %v764 = vld [vmem:[%s750 + $0x34] sm:$0xf]
    %v765 = vld [vmem:[%s750 + $0x38] sm:$0xf]
    %v766 = vld [vmem:[%s750 + $0x3c] sm:$0xf]
    %s767 = scalar_lea.vmem [#allocation7], 6
    %v768 = vld [vmem:[%s767] sm:$0x1]
    %v770 = vlaneseq
    %v771 = vshrl.u32 %v770, 7
    %v772 = vsub.s32 0, %v771
    %v773 = vrot.slane %v768, %v772
    %v791 = vunpack.c.l.b16 %v751
    %v792 = vunpack.c.l.b16 %v752
    %v793 = vunpack.c.l.b16 %v753
    %v794 = vunpack.c.l.b16 %v754
    %v795 = vunpack.c.l.b16 %v755
    %v796 = vunpack.c.l.b16 %v756
    %v797 = vunpack.c.l.b16 %v757
    %v798 = vunpack.c.l.b16 %v758
    %v799 = vunpack.c.l.b16 %v759
    %v800 = vunpack.c.l.b16 %v760
    %v801 = vunpack.c.l.b16 %v761
    %v802 = vunpack.c.l.b16 %v762
    %v803 = vunpack.c.l.b16 %v763
    %v804 = vunpack.c.l.b16 %v764
    %v805 = vunpack.c.l.b16 %v765
    %v806 = vunpack.c.l.b16 %v766
    %v807 = vpack.c.b16 %v792, %v791
    %v808 = vpack.c.b16 %v794, %v793
    %v809 = vpack.c.b16 %v796, %v795
    %v810 = vpack.c.b16 %v798, %v797
    %v811 = vpack.c.b16 %v800, %v799
    %v812 = vpack.c.b16 %v802, %v801
    %v813 = vpack.c.b16 %v804, %v803
    %v814 = vpack.c.b16 %v806, %v805
    %823 = vmatprep.subr.bf16.mxu0 0
    %824 = vmatpush1.bf16.msra.mxu0 %v807
    %825 = vmatprep.subr.bf16.mxu0 0
    %826 = vmatpush1.bf16.msra.mxu0 %v808
    %827 = vmatprep.subr.bf16.mxu0 0
    %828 = vmatpush1.bf16.msra.mxu0 %v809
    %829 = vmatprep.subr.bf16.mxu0 0
    %830 = vmatpush1.bf16.msra.mxu0 %v810
    %831 = vmatprep.subr.bf16.mxu0 0
    %832 = vmatpush1.bf16.msra.mxu0 %v811
    %833 = vmatprep.subr.bf16.mxu0 0
    %834 = vmatpush1.bf16.msra.mxu0 %v812
    %835 = vmatprep.subr.bf16.mxu0 0
    %836 = vmatpush1.bf16.msra.mxu0 %v813
    %837 = vmatprep.subr.bf16.mxu0 0
    %838 = vmatpush1.bf16.msra.mxu0 %v814
    %839 = vmatprep.subr.bf16.mxu0 0
    %840 = vmatpush1.bf16.msra.mxu0 0
    %841 = vmatprep.subr.bf16.mxu0 0
    %842 = vmatpush1.bf16.msra.mxu0 0
    %843 = vmatprep.subr.bf16.mxu0 0
    %844 = vmatpush1.bf16.msra.mxu0 0
    %845 = vmatprep.subr.bf16.mxu0 0
    %846 = vmatpush1.bf16.msra.mxu0 0
    %847 = vmatprep.subr.bf16.mxu0 0
    %848 = vmatpush1.bf16.msra.mxu0 0
    %849 = vmatprep.subr.bf16.mxu0 0
    %850 = vmatpush1.bf16.msra.mxu0 0
    %851 = vmatprep.subr.bf16.mxu0 0
    %852 = vmatpush1.bf16.msra.mxu0 0
    %853 = vmatprep.subr.bf16.mxu0 0
    %854 = vmatpush1.bf16.msra.mxu0 0
    %855 = vmatprep.mubr.bf16.mxu0 0
    %856 = vmatmul.mubr.bf16.gmra.mrb[0].mxu0 %v749
    %v857 = vpop.f32.mrb[0].mxu0
    %v858 = vadd.f32 %v773, %v857
    %v859 = vpop.f32.mrb[0].mxu0
    %v860 = vpop.f32.mrb[0].mxu0
    %v861 = vpop.f32.mrb[0].mxu0
    %862 = vdwg.mxu0
    %v863 = vpack.c.bf16 %v858, %v858
    %s864 = scalar_lea.vmem [#allocation5], 448
    %v865 = vld [vmem:[%s864] sm:$0xf]
    %v866 = vld [vmem:[%s864 + $0x4] sm:$0xf]
    %v867 = vld [vmem:[%s864 + $0x8] sm:$0xf]
    %v868 = vld [vmem:[%s864 + $0xc] sm:$0xf]
    %v869 = vld [vmem:[%s864 + $0x10] sm:$0xf]
    %v870 = vld [vmem:[%s864 + $0x14] sm:$0xf]
    %v871 = vld [vmem:[%s864 + $0x18] sm:$0xf]
    %v872 = vld [vmem:[%s864 + $0x1c] sm:$0xf]
    %v873 = vld [vmem:[%s864 + $0x20] sm:$0xf]
    %v874 = vld [vmem:[%s864 + $0x24] sm:$0xf]
    %v875 = vld [vmem:[%s864 + $0x28] sm:$0xf]
    %v876 = vld [vmem:[%s864 + $0x2c] sm:$0xf]
    %v877 = vld [vmem:[%s864 + $0x30] sm:$0xf]
    %v878 = vld [vmem:[%s864 + $0x34] sm:$0xf]
    %v879 = vld [vmem:[%s864 + $0x38] sm:$0xf]
    %v880 = vld [vmem:[%s864 + $0x3c] sm:$0xf]
    %s881 = scalar_lea.vmem [#allocation7], 7
    %v882 = vld [vmem:[%s881] sm:$0x1]
    %v884 = vlaneseq
    %v885 = vshrl.u32 %v884, 7
    %v886 = vsub.s32 0, %v885
    %v887 = vrot.slane %v882, %v886
    %v905 = vunpack.c.l.b16 %v865
    %v906 = vunpack.c.l.b16 %v866
    %v907 = vunpack.c.l.b16 %v867
    %v908 = vunpack.c.l.b16 %v868
    %v909 = vunpack.c.l.b16 %v869
    %v910 = vunpack.c.l.b16 %v870
    %v911 = vunpack.c.l.b16 %v871
    %v912 = vunpack.c.l.b16 %v872
    %v913 = vunpack.c.l.b16 %v873
    %v914 = vunpack.c.l.b16 %v874
    %v915 = vunpack.c.l.b16 %v875
    %v916 = vunpack.c.l.b16 %v876
    %v917 = vunpack.c.l.b16 %v877
    %v918 = vunpack.c.l.b16 %v878
    %v919 = vunpack.c.l.b16 %v879
    %v920 = vunpack.c.l.b16 %v880
    %v921 = vpack.c.b16 %v906, %v905
    %v922 = vpack.c.b16 %v908, %v907
    %v923 = vpack.c.b16 %v910, %v909
    %v924 = vpack.c.b16 %v912, %v911
    %v925 = vpack.c.b16 %v914, %v913
    %v926 = vpack.c.b16 %v916, %v915
    %v927 = vpack.c.b16 %v918, %v917
    %v928 = vpack.c.b16 %v920, %v919
    %937 = vmatprep.subr.bf16.mxu0 0
    %938 = vmatpush1.bf16.msra.mxu0 %v921
    %939 = vmatprep.subr.bf16.mxu0 0
    %940 = vmatpush1.bf16.msra.mxu0 %v922
    %941 = vmatprep.subr.bf16.mxu0 0
    %942 = vmatpush1.bf16.msra.mxu0 %v923
    %943 = vmatprep.subr.bf16.mxu0 0
    %944 = vmatpush1.bf16.msra.mxu0 %v924
    %945 = vmatprep.subr.bf16.mxu0 0
    %946 = vmatpush1.bf16.msra.mxu0 %v925
    %947 = vmatprep.subr.bf16.mxu0 0
    %948 = vmatpush1.bf16.msra.mxu0 %v926
    %949 = vmatprep.subr.bf16.mxu0 0
    %950 = vmatpush1.bf16.msra.mxu0 %v927
    %951 = vmatprep.subr.bf16.mxu0 0
    %952 = vmatpush1.bf16.msra.mxu0 %v928
    %953 = vmatprep.subr.bf16.mxu0 0
    %954 = vmatpush1.bf16.msra.mxu0 0
    %955 = vmatprep.subr.bf16.mxu0 0
    %956 = vmatpush1.bf16.msra.mxu0 0
    %957 = vmatprep.subr.bf16.mxu0 0
    %958 = vmatpush1.bf16.msra.mxu0 0
    %959 = vmatprep.subr.bf16.mxu0 0
    %960 = vmatpush1.bf16.msra.mxu0 0
    %961 = vmatprep.subr.bf16.mxu0 0
    %962 = vmatpush1.bf16.msra.mxu0 0
    %963 = vmatprep.subr.bf16.mxu0 0
    %964 = vmatpush1.bf16.msra.mxu0 0
    %965 = vmatprep.subr.bf16.mxu0 0
    %966 = vmatpush1.bf16.msra.mxu0 0
    %967 = vmatprep.subr.bf16.mxu0 0
    %968 = vmatpush1.bf16.msra.mxu0 0
    %969 = vmatprep.mubr.bf16.mxu0 0
    %970 = vmatmul.mubr.bf16.gmra.mrb[0].mxu0 %v863
    %v971 = vpop.f32.mrb[0].mxu0
    %v972 = vadd.f32 %v887, %v971
    %v973 = vpop.f32.mrb[0].mxu0
    %v974 = vpop.f32.mrb[0].mxu0
    %v975 = vpop.f32.mrb[0].mxu0
    %976 = vdwg.mxu0
    %v977 = vpack.c.bf16 %v972, %v972
    %s978 = scalar_lea.vmem [#allocation5], 512
    %v979 = vld [vmem:[%s978] sm:$0xf]
    %v980 = vld [vmem:[%s978 + $0x4] sm:$0xf]
    %v981 = vld [vmem:[%s978 + $0x8] sm:$0xf]
    %v982 = vld [vmem:[%s978 + $0xc] sm:$0xf]
    %v983 = vld [vmem:[%s978 + $0x10] sm:$0xf]
    %v984 = vld [vmem:[%s978 + $0x14] sm:$0xf]
    %v985 = vld [vmem:[%s978 + $0x18] sm:$0xf]
    %v986 = vld [vmem:[%s978 + $0x1c] sm:$0xf]
    %v987 = vld [vmem:[%s978 + $0x20] sm:$0xf]
    %v988 = vld [vmem:[%s978 + $0x24] sm:$0xf]
    %v989 = vld [vmem:[%s978 + $0x28] sm:$0xf]
    %v990 = vld [vmem:[%s978 + $0x2c] sm:$0xf]
    %v991 = vld [vmem:[%s978 + $0x30] sm:$0xf]
    %v992 = vld [vmem:[%s978 + $0x34] sm:$0xf]
    %v993 = vld [vmem:[%s978 + $0x38] sm:$0xf]
    %v994 = vld [vmem:[%s978 + $0x3c] sm:$0xf]
    %s995 = scalar_lea.vmem [#allocation7], 8
    %v996 = vld [vmem:[%s995] sm:$0x1]
    %v998 = vlaneseq
    %v999 = vshrl.u32 %v998, 7
    %v1000 = vsub.s32 0, %v999
    %v1001 = vrot.slane %v996, %v1000
    %v1019 = vunpack.c.l.b16 %v979
    %v1020 = vunpack.c.l.b16 %v980
    %v1021 = vunpack.c.l.b16 %v981
    %v1022 = vunpack.c.l.b16 %v982
    %v1023 = vunpack.c.l.b16 %v983
    %v1024 = vunpack.c.l.b16 %v984
    %v1025 = vunpack.c.l.b16 %v985
    %v1026 = vunpack.c.l.b16 %v986
    %v1027 = vunpack.c.l.b16 %v987
    %v1028 = vunpack.c.l.b16 %v988
    %v1029 = vunpack.c.l.b16 %v989
    %v1030 = vunpack.c.l.b16 %v990
    %v1031 = vunpack.c.l.b16 %v991
    %v1032 = vunpack.c.l.b16 %v992
    %v1033 = vunpack.c.l.b16 %v993
    %v1034 = vunpack.c.l.b16 %v994
    %v1035 = vpack.c.b16 %v1020, %v1019
    %v1036 = vpack.c.b16 %v1022, %v1021
    %v1037 = vpack.c.b16 %v1024, %v1023
    %v1038 = vpack.c.b16 %v1026, %v1025
    %v1039 = vpack.c.b16 %v1028, %v1027
    %v1040 = vpack.c.b16 %v1030, %v1029
    %v1041 = vpack.c.b16 %v1032, %v1031
    %v1042 = vpack.c.b16 %v1034, %v1033
    %1051 = vmatprep.subr.bf16.mxu0 0
    %1052 = vmatpush1.bf16.msra.mxu0 %v1035
    %1053 = vmatprep.subr.bf16.mxu0 0
    %1054 = vmatpush1.bf16.msra.mxu0 %v1036
    %1055 = vmatprep.subr.bf16.mxu0 0
    %1056 = vmatpush1.bf16.msra.mxu0 %v1037
    %1057 = vmatprep.subr.bf16.mxu0 0
    %1058 = vmatpush1.bf16.msra.mxu0 %v1038
    %1059 = vmatprep.subr.bf16.mxu0 0
    %1060 = vmatpush1.bf16.msra.mxu0 %v1039
    %1061 = vmatprep.subr.bf16.mxu0 0
    %1062 = vmatpush1.bf16.msra.mxu0 %v1040
    %1063 = vmatprep.subr.bf16.mxu0 0
    %1064 = vmatpush1.bf16.msra.mxu0 %v1041
    %1065 = vmatprep.subr.bf16.mxu0 0
    %1066 = vmatpush1.bf16.msra.mxu0 %v1042
    %1067 = vmatprep.subr.bf16.mxu0 0
    %1068 = vmatpush1.bf16.msra.mxu0 0
    %1069 = vmatprep.subr.bf16.mxu0 0
    %1070 = vmatpush1.bf16.msra.mxu0 0
    %1071 = vmatprep.subr.bf16.mxu0 0
    %1072 = vmatpush1.bf16.msra.mxu0 0
    %1073 = vmatprep.subr.bf16.mxu0 0
    %1074 = vmatpush1.bf16.msra.mxu0 0
    %1075 = vmatprep.subr.bf16.mxu0 0
    %1076 = vmatpush1.bf16.msra.mxu0 0
    %1077 = vmatprep.subr.bf16.mxu0 0
    %1078 = vmatpush1.bf16.msra.mxu0 0
    %1079 = vmatprep.subr.bf16.mxu0 0
    %1080 = vmatpush1.bf16.msra.mxu0 0
    %1081 = vmatprep.subr.bf16.mxu0 0
    %1082 = vmatpush1.bf16.msra.mxu0 0
    %1083 = vmatprep.mubr.bf16.mxu0 0
    %1084 = vmatmul.mubr.bf16.gmra.mrb[0].mxu0 %v977
    %v1085 = vpop.f32.mrb[0].mxu0
    %v1086 = vadd.f32 %v1001, %v1085
    %v1087 = vpop.f32.mrb[0].mxu0
    %v1088 = vpop.f32.mrb[0].mxu0
    %v1089 = vpop.f32.mrb[0].mxu0
    %1090 = vdwg.mxu0
    %1091 = vst [vmem:[#allocation8 + $0x18] sm:$0xff] %v1086
    %v1092 = vld [vmem:[#allocation2 + $0x20] sm:$0xff]
    %v1093 = vpack.c.bf16 %v1092, %v1092
    %s1094 = scalar_lea.vmem [#allocation5], 576
    %v1095 = vld [vmem:[%s1094] sm:$0xf]
    %v1096 = vld [vmem:[%s1094 + $0x4] sm:$0xf]
    %v1097 = vld [vmem:[%s1094 + $0x8] sm:$0xf]
    %v1098 = vld [vmem:[%s1094 + $0xc] sm:$0xf]
    %v1099 = vld [vmem:[%s1094 + $0x10] sm:$0xf]
    %v1100 = vld [vmem:[%s1094 + $0x14] sm:$0xf]
    %v1101 = vld [vmem:[%s1094 + $0x18] sm:$0xf]
    %v1102 = vld [vmem:[%s1094 + $0x1c] sm:$0xf]
    %v1103 = vld [vmem:[%s1094 + $0x20] sm:$0xf]
    %v1104 = vld [vmem:[%s1094 + $0x24] sm:$0xf]
    %v1105 = vld [vmem:[%s1094 + $0x28] sm:$0xf]
    %v1106 = vld [vmem:[%s1094 + $0x2c] sm:$0xf]
    %v1107 = vld [vmem:[%s1094 + $0x30] sm:$0xf]
    %v1108 = vld [vmem:[%s1094 + $0x34] sm:$0xf]
    %v1109 = vld [vmem:[%s1094 + $0x38] sm:$0xf]
    %v1110 = vld [vmem:[%s1094 + $0x3c] sm:$0xf]
    %s1111 = scalar_lea.vmem [#allocation7], 9
    %v1112 = vld [vmem:[%s1111] sm:$0x1]
    %v1114 = vlaneseq
    %v1115 = vshrl.u32 %v1114, 7
    %v1116 = vsub.s32 0, %v1115
    %v1117 = vrot.slane %v1112, %v1116
    %v1135 = vunpack.c.l.b16 %v1095
    %v1136 = vunpack.c.l.b16 %v1096
    %v1137 = vunpack.c.l.b16 %v1097
    %v1138 = vunpack.c.l.b16 %v1098
    %v1139 = vunpack.c.l.b16 %v1099
    %v1140 = vunpack.c.l.b16 %v1100
    %v1141 = vunpack.c.l.b16 %v1101
    %v1142 = vunpack.c.l.b16 %v1102
    %v1143 = vunpack.c.l.b16 %v1103
    %v1144 = vunpack.c.l.b16 %v1104
    %v1145 = vunpack.c.l.b16 %v1105
    %v1146 = vunpack.c.l.b16 %v1106
    %v1147 = vunpack.c.l.b16 %v1107
    %v1148 = vunpack.c.l.b16 %v1108
    %v1149 = vunpack.c.l.b16 %v1109
    %v1150 = vunpack.c.l.b16 %v1110
    %v1151 = vpack.c.b16 %v1136, %v1135
    %v1152 = vpack.c.b16 %v1138, %v1137
    %v1153 = vpack.c.b16 %v1140, %v1139
    %v1154 = vpack.c.b16 %v1142, %v1141
    %v1155 = vpack.c.b16 %v1144, %v1143
    %v1156 = vpack.c.b16 %v1146, %v1145
    %v1157 = vpack.c.b16 %v1148, %v1147
    %v1158 = vpack.c.b16 %v1150, %v1149
    %1167 = vmatprep.subr.bf16.mxu0 0
    %1168 = vmatpush1.bf16.msra.mxu0 %v1151
    %1169 = vmatprep.subr.bf16.mxu0 0
    %1170 = vmatpush1.bf16.msra.mxu0 %v1152
    %1171 = vmatprep.subr.bf16.mxu0 0
    %1172 = vmatpush1.bf16.msra.mxu0 %v1153
    %1173 = vmatprep.subr.bf16.mxu0 0
    %1174 = vmatpush1.bf16.msra.mxu0 %v1154
    %1175 = vmatprep.subr.bf16.mxu0 0
    %1176 = vmatpush1.bf16.msra.mxu0 %v1155
    %1177 = vmatprep.subr.bf16.mxu0 0
    %1178 = vmatpush1.bf16.msra.mxu0 %v1156
    %1179 = vmatprep.subr.bf16.mxu0 0
    %1180 = vmatpush1.bf16.msra.mxu0 %v1157
    %1181 = vmatprep.subr.bf16.mxu0 0
    %1182 = vmatpush1.bf16.msra.mxu0 %v1158
    %1183 = vmatprep.subr.bf16.mxu0 0
    %1184 = vmatpush1.bf16.msra.mxu0 0
    %1185 = vmatprep.subr.bf16.mxu0 0
    %1186 = vmatpush1.bf16.msra.mxu0 0
    %1187 = vmatprep.subr.bf16.mxu0 0
    %1188 = vmatpush1.bf16.msra.mxu0 0
    %1189 = vmatprep.subr.bf16.mxu0 0
    %1190 = vmatpush1.bf16.msra.mxu0 0
    %1191 = vmatprep.subr.bf16.mxu0 0
    %1192 = vmatpush1.bf16.msra.mxu0 0
    %1193 = vmatprep.subr.bf16.mxu0 0
    %1194 = vmatpush1.bf16.msra.mxu0 0
    %1195 = vmatprep.subr.bf16.mxu0 0
    %1196 = vmatpush1.bf16.msra.mxu0 0
    %1197 = vmatprep.subr.bf16.mxu0 0
    %1198 = vmatpush1.bf16.msra.mxu0 0
    %1199 = vmatprep.mubr.bf16.mxu0 0
    %1200 = vmatmul.mubr.bf16.gmra.mrb[0].mxu0 %v1093
    %v1201 = vpop.f32.mrb[0].mxu0
    %v1202 = vadd.f32 %v1117, %v1201
    %v1203 = vpop.f32.mrb[0].mxu0
    %v1204 = vpop.f32.mrb[0].mxu0
    %v1205 = vpop.f32.mrb[0].mxu0
    %1206 = vdwg.mxu0
    %v1207 = vpack.c.bf16 %v1202, %v1202
    %s1208 = scalar_lea.vmem [#allocation5], 640
    %v1209 = vld [vmem:[%s1208] sm:$0xf]
    %v1210 = vld [vmem:[%s1208 + $0x4] sm:$0xf]
    %v1211 = vld [vmem:[%s1208 + $0x8] sm:$0xf]
    %v1212 = vld [vmem:[%s1208 + $0xc] sm:$0xf]
    %v1213 = vld [vmem:[%s1208 + $0x10] sm:$0xf]
    %v1214 = vld [vmem:[%s1208 + $0x14] sm:$0xf]
    %v1215 = vld [vmem:[%s1208 + $0x18] sm:$0xf]
    %v1216 = vld [vmem:[%s1208 + $0x1c] sm:$0xf]
    %v1217 = vld [vmem:[%s1208 + $0x20] sm:$0xf]
    %v1218 = vld [vmem:[%s1208 + $0x24] sm:$0xf]
    %v1219 = vld [vmem:[%s1208 + $0x28] sm:$0xf]
    %v1220 = vld [vmem:[%s1208 + $0x2c] sm:$0xf]
    %v1221 = vld [vmem:[%s1208 + $0x30] sm:$0xf]
    %v1222 = vld [vmem:[%s1208 + $0x34] sm:$0xf]
    %v1223 = vld [vmem:[%s1208 + $0x38] sm:$0xf]
    %v1224 = vld [vmem:[%s1208 + $0x3c] sm:$0xf]
    %s1225 = scalar_lea.vmem [#allocation7], 10
    %v1226 = vld [vmem:[%s1225] sm:$0x1]
    %v1228 = vlaneseq
    %v1229 = vshrl.u32 %v1228, 7
    %v1230 = vsub.s32 0, %v1229
    %v1231 = vrot.slane %v1226, %v1230
    %v1249 = vunpack.c.l.b16 %v1209
    %v1250 = vunpack.c.l.b16 %v1210
    %v1251 = vunpack.c.l.b16 %v1211
    %v1252 = vunpack.c.l.b16 %v1212
    %v1253 = vunpack.c.l.b16 %v1213
    %v1254 = vunpack.c.l.b16 %v1214
    %v1255 = vunpack.c.l.b16 %v1215
    %v1256 = vunpack.c.l.b16 %v1216
    %v1257 = vunpack.c.l.b16 %v1217
    %v1258 = vunpack.c.l.b16 %v1218
    %v1259 = vunpack.c.l.b16 %v1219
    %v1260 = vunpack.c.l.b16 %v1220
    %v1261 = vunpack.c.l.b16 %v1221
    %v1262 = vunpack.c.l.b16 %v1222
    %v1263 = vunpack.c.l.b16 %v1223
    %v1264 = vunpack.c.l.b16 %v1224
    %v1265 = vpack.c.b16 %v1250, %v1249
    %v1266 = vpack.c.b16 %v1252, %v1251
    %v1267 = vpack.c.b16 %v1254, %v1253
    %v1268 = vpack.c.b16 %v1256, %v1255
    %v1269 = vpack.c.b16 %v1258, %v1257
    %v1270 = vpack.c.b16 %v1260, %v1259
    %v1271 = vpack.c.b16 %v1262, %v1261
    %v1272 = vpack.c.b16 %v1264, %v1263
    %1281 = vmatprep.subr.bf16.mxu0 0
    %1282 = vmatpush1.bf16.msra.mxu0 %v1265
    %1283 = vmatprep.subr.bf16.mxu0 0
    %1284 = vmatpush1.bf16.msra.mxu0 %v1266
    %1285 = vmatprep.subr.bf16.mxu0 0
    %1286 = vmatpush1.bf16.msra.mxu0 %v1267
    %1287 = vmatprep.subr.bf16.mxu0 0
    %1288 = vmatpush1.bf16.msra.mxu0 %v1268
    %1289 = vmatprep.subr.bf16.mxu0 0
    %1290 = vmatpush1.bf16.msra.mxu0 %v1269
    %1291 = vmatprep.subr.bf16.mxu0 0
    %1292 = vmatpush1.bf16.msra.mxu0 %v1270
    %1293 = vmatprep.subr.bf16.mxu0 0
    %1294 = vmatpush1.bf16.msra.mxu0 %v1271
    %1295 = vmatprep.subr.bf16.mxu0 0
    %1296 = vmatpush1.bf16.msra.mxu0 %v1272
    %1297 = vmatprep.subr.bf16.mxu0 0
    %1298 = vmatpush1.bf16.msra.mxu0 0
    %1299 = vmatprep.subr.bf16.mxu0 0
    %1300 = vmatpush1.bf16.msra.mxu0 0
    %1301 = vmatprep.subr.bf16.mxu0 0
    %1302 = vmatpush1.bf16.msra.mxu0 0
    %1303 = vmatprep.subr.bf16.mxu0 0
    %1304 = vmatpush1.bf16.msra.mxu0 0
    %1305 = vmatprep.subr.bf16.mxu0 0
    %1306 = vmatpush1.bf16.msra.mxu0 0
    %1307 = vmatprep.subr.bf16.mxu0 0
    %1308 = vmatpush1.bf16.msra.mxu0 0
    %1309 = vmatprep.subr.bf16.mxu0 0
    %1310 = vmatpush1.bf16.msra.mxu0 0
    %1311 = vmatprep.subr.bf16.mxu0 0
    %1312 = vmatpush1.bf16.msra.mxu0 0
    %1313 = vmatprep.mubr.bf16.mxu0 0
    %1314 = vmatmul.mubr.bf16.gmra.mrb[0].mxu0 %v1207
    %v1315 = vpop.f32.mrb[0].mxu0
    %v1316 = vadd.f32 %v1231, %v1315
    %v1317 = vpop.f32.mrb[0].mxu0
    %v1318 = vpop.f32.mrb[0].mxu0
    %v1319 = vpop.f32.mrb[0].mxu0
    %1320 = vdwg.mxu0
    %v1321 = vpack.c.bf16 %v1316, %v1316
    %s1322 = scalar_lea.vmem [#allocation5], 704
    %v1323 = vld [vmem:[%s1322] sm:$0xf]
    %v1324 = vld [vmem:[%s1322 + $0x4] sm:$0xf]
    %v1325 = vld [vmem:[%s1322 + $0x8] sm:$0xf]
    %v1326 = vld [vmem:[%s1322 + $0xc] sm:$0xf]
    %v1327 = vld [vmem:[%s1322 + $0x10] sm:$0xf]
    %v1328 = vld [vmem:[%s1322 + $0x14] sm:$0xf]
    %v1329 = vld [vmem:[%s1322 + $0x18] sm:$0xf]
    %v1330 = vld [vmem:[%s1322 + $0x1c] sm:$0xf]
    %v1331 = vld [vmem:[%s1322 + $0x20] sm:$0xf]
    %v1332 = vld [vmem:[%s1322 + $0x24] sm:$0xf]
    %v1333 = vld [vmem:[%s1322 + $0x28] sm:$0xf]
    %v1334 = vld [vmem:[%s1322 + $0x2c] sm:$0xf]
    %v1335 = vld [vmem:[%s1322 + $0x30] sm:$0xf]
    %v1336 = vld [vmem:[%s1322 + $0x34] sm:$0xf]
    %v1337 = vld [vmem:[%s1322 + $0x38] sm:$0xf]
    %v1338 = vld [vmem:[%s1322 + $0x3c] sm:$0xf]
    %s1339 = scalar_lea.vmem [#allocation7], 11
    %v1340 = vld [vmem:[%s1339] sm:$0x1]
    %v1342 = vlaneseq
    %v1343 = vshrl.u32 %v1342, 7
    %v1344 = vsub.s32 0, %v1343
    %v1345 = vrot.slane %v1340, %v1344
    %v1363 = vunpack.c.l.b16 %v1323
    %v1364 = vunpack.c.l.b16 %v1324
    %v1365 = vunpack.c.l.b16 %v1325
    %v1366 = vunpack.c.l.b16 %v1326
    %v1367 = vunpack.c.l.b16 %v1327
    %v1368 = vunpack.c.l.b16 %v1328
    %v1369 = vunpack.c.l.b16 %v1329
    %v1370 = vunpack.c.l.b16 %v1330
    %v1371 = vunpack.c.l.b16 %v1331
    %v1372 = vunpack.c.l.b16 %v1332
    %v1373 = vunpack.c.l.b16 %v1333
    %v1374 = vunpack.c.l.b16 %v1334
    %v1375 = vunpack.c.l.b16 %v1335
    %v1376 = vunpack.c.l.b16 %v1336
    %v1377 = vunpack.c.l.b16 %v1337
    %v1378 = vunpack.c.l.b16 %v1338
    %v1379 = vpack.c.b16 %v1364, %v1363
    %v1380 = vpack.c.b16 %v1366, %v1365
    %v1381 = vpack.c.b16 %v1368, %v1367
    %v1382 = vpack.c.b16 %v1370, %v1369
    %v1383 = vpack.c.b16 %v1372, %v1371
    %v1384 = vpack.c.b16 %v1374, %v1373
    %v1385 = vpack.c.b16 %v1376, %v1375
    %v1386 = vpack.c.b16 %v1378, %v1377
    %1395 = vmatprep.subr.bf16.mxu0 0
    %1396 = vmatpush1.bf16.msra.mxu0 %v1379
    %1397 = vmatprep.subr.bf16.mxu0 0
    %1398 = vmatpush1.bf16.msra.mxu0 %v1380
    %1399 = vmatprep.subr.bf16.mxu0 0
    %1400 = vmatpush1.bf16.msra.mxu0 %v1381
    %1401 = vmatprep.subr.bf16.mxu0 0
    %1402 = vmatpush1.bf16.msra.mxu0 %v1382
    %1403 = vmatprep.subr.bf16.mxu0 0
    %1404 = vmatpush1.bf16.msra.mxu0 %v1383
    %1405 = vmatprep.subr.bf16.mxu0 0
    %1406 = vmatpush1.bf16.msra.mxu0 %v1384
    %1407 = vmatprep.subr.bf16.mxu0 0
    %1408 = vmatpush1.bf16.msra.mxu0 %v1385
    %1409 = vmatprep.subr.bf16.mxu0 0
    %1410 = vmatpush1.bf16.msra.mxu0 %v1386
    %1411 = vmatprep.subr.bf16.mxu0 0
    %1412 = vmatpush1.bf16.msra.mxu0 0
    %1413 = vmatprep.subr.bf16.mxu0 0
    %1414 = vmatpush1.bf16.msra.mxu0 0
    %1415 = vmatprep.subr.bf16.mxu0 0
    %1416 = vmatpush1.bf16.msra.mxu0 0
    %1417 = vmatprep.subr.bf16.mxu0 0
    %1418 = vmatpush1.bf16.msra.mxu0 0
    %1419 = vmatprep.subr.bf16.mxu0 0
    %1420 = vmatpush1.bf16.msra.mxu0 0
    %1421 = vmatprep.subr.bf16.mxu0 0
    %1422 = vmatpush1.bf16.msra.mxu0 0
    %1423 = vmatprep.subr.bf16.mxu0 0
    %1424 = vmatpush1.bf16.msra.mxu0 0
    %1425 = vmatprep.subr.bf16.mxu0 0
    %1426 = vmatpush1.bf16.msra.mxu0 0
    %1427 = vmatprep.mubr.bf16.mxu0 0
    %1428 = vmatmul.mubr.bf16.gmra.mrb[0].mxu0 %v1321
    %v1429 = vpop.f32.mrb[0].mxu0
    %v1430 = vadd.f32 %v1345, %v1429
    %v1431 = vpop.f32.mrb[0].mxu0
    %v1432 = vpop.f32.mrb[0].mxu0
    %v1433 = vpop.f32.mrb[0].mxu0
    %1434 = vdwg.mxu0
    %1435 = vst [vmem:[#allocation8 + $0x20] sm:$0xff] %v1430
    // Predicated region
    $region26: #{tpu_custom_call.1} parent=1 // pred_check
      _
    $region27: #{tpu_custom_call.1} parent=1 // pred_check_branch
      %1437 = sbr.rel (0) target = $region29
    $region28: #{tpu_custom_call.1} parent=1 // pred_region
      %s1439 = ssub.s32 640, 640
      %1440 = vsyncadd [#allocation4], %s1439
      %s1441 = sshll.u32 [#allocation8], 4
      %s1442 = int_to_ptr.vmem [resolvable:$true] %s1441
      %1447 = dma.vmem_to_hbm [thread:$0]  %s1442, 640, %s3, [#allocation4], 128, 128, 8
    $region29: #{tpu_custom_call.1} parent=1 // pred_fallthru
      _
    // Predicated region
    $region30: #{tpu_custom_call.1} parent=1 // pred_check
      _
    $region31: #{tpu_custom_call.1} parent=1 // pred_check_branch
      %1449 = sbr.rel (0) target = $region33
    $region32: #{tpu_custom_call.1} parent=1 // pred_region
      %1450 = dma.done [#allocation4], 640
    $region33: #{tpu_custom_call.1} parent=1 // pred_fallthru
      _
    %1451 = vsyncpa [#allocation3], 1
    %1452 = vsyncpa [#allocation6], 1
    %1453 = vsyncpa [#allocation4], 1

</llo_original>
